<compile_context>
chip_gen: v7x
topology: tpu7x:2x2x1
jax: 0.10.0
libtpu: 0.0.40
codegen_flags: <defaults>
</compile_context>

<pallas_src>
import math
import functools

import jax
import jax.numpy as jnp
from jax.experimental import pallas as pl
from jax.experimental.pallas import tpu as pltpu


# --------------------------------------------------------------------------
# Pallas kernel
# --------------------------------------------------------------------------
def _layernorm(x, gamma, beta, eps=1e-5):
    mu = jnp.mean(x, axis=-1, keepdims=True)
    var = jnp.mean(jnp.square(x - mu), axis=-1, keepdims=True)
    return (x - mu) * jax.lax.rsqrt(var + eps) * gamma + beta


def encoder_stack_kernel(num_heads,
                         x_ref, bias_ref, wqkv_ref, wo_ref, w1_ref, w2_ref,
                         vec_ref, wc_ref, bc_ref,
                         act_ref, logits_ref):
    """Grid = (batch_block, layer). One post-LN encoder layer per invocation.

    The activation is the resident output block across the layer axis (seeded
    from x_ref at layer 0); the classifier runs under pl.when on the last layer.
    """
    l = pl.program_id(1)

    @pl.when(l == 0)
    def _():
        act_ref[...] = x_ref[...]

    Bt, S, D = act_ref.shape
    H = num_heads
    dk = D // H
    G = H * Bt                       # head-major grouped batch for attention
    M = Bt * S                       # matmul M dimension
    F = w1_ref.shape[1]
    scale = 1.0 / math.sqrt(dk)

    # packed per-layer vectors: one DMA instead of ~8 tiny ones
    vec = vec_ref[...]               # (8, Vpad) f32
    bqkv = vec[0:1, :3 * D]
    bo = vec[1:2, :D]
    g1 = vec[2:3, :D]
    be1 = vec[3:4, :D]
    b1 = vec[4:5, :F]
    b2 = vec[5:6, :D]
    g2 = vec[6:7, :D]
    be2 = vec[7:8, :D]

    xb = act_ref[...]                                  # (Bt, S, D) bf16 resident
    x32 = xb.astype(jnp.float32).reshape(M, D)
    x2 = xb.reshape(M, D)

    # --- fused QKV projection (bf16 MXU inputs, f32 accumulation) ----------
    qkv = jnp.dot(x2, wqkv_ref[...],
                  preferred_element_type=jnp.float32) + bqkv      # (M, 3D)
    qkv = qkv.astype(jnp.bfloat16)

    # head split: wqkv columns are pre-interleaved [q_h|k_h|v_h] per head, so
    # this is H contiguous lane slices + 3 sub-slices (no transposes).
    blocks = jnp.stack(
        [qkv[:, h * 3 * dk:(h + 1) * 3 * dk].reshape(Bt, S, 3 * dk)
         for h in range(H)], axis=0)                   # (H, Bt, S, 3dk)
    blocks = blocks.reshape(G, S, 3 * dk)
    qh = blocks[:, :, :dk]
    kh = blocks[:, :, dk:2 * dk]
    vh = blocks[:, :, 2 * dk:]

    # --- batched attention over g = (head, batch) ---------------------------
    scores = jnp.einsum('gqd,gkd->gqk', qh, kh,
                        preferred_element_type=jnp.float32) * scale
    bias = bias_ref[...]                               # (Bt, 1, S) additive key mask
    bias_g = jnp.broadcast_to(bias[None], (H, Bt, 1, S)).reshape(G, 1, S)
    scores = scores + bias_g
    scores = scores - jnp.max(scores, axis=-1, keepdims=True)
    p = jnp.exp(scores)
    p = p / jnp.sum(p, axis=-1, keepdims=True)         # exact divide (parity w/ ref)

    ctx = jnp.einsum('gqk,gkd->gqd', p.astype(jnp.bfloat16), vh,
                     preferred_element_type=jnp.float32)          # (G, S, dk)
    ctx = ctx.astype(jnp.bfloat16).reshape(H, Bt, S, dk)

    # merge heads with a lane concat, then ONE (M,D)@(D,D) output projection
    ctx_m = jnp.concatenate(
        [ctx[h].reshape(M, dk) for h in range(H)], axis=-1)       # (M, D) bf16
    attn = jnp.dot(ctx_m, wo_ref[...],
                   preferred_element_type=jnp.float32) + bo       # (M, D)

    x1 = _layernorm(x32 + attn, g1, be1)               # post-LN, f32

    # --- feed-forward (ReLU) -------------------------------------------------
    h1 = jnp.dot(x1.astype(jnp.bfloat16), w1_ref[...],
                 preferred_element_type=jnp.float32) + b1
    h1 = jnp.maximum(h1, 0.0)
    ff = jnp.dot(h1.astype(jnp.bfloat16), w2_ref[...],
                 preferred_element_type=jnp.float32) + b2

    out = _layernorm(x1 + ff, g2, be2)                 # (M, D) f32

    act_ref[...] = out.reshape(Bt, S, D).astype(act_ref.dtype)

    # fused classifier head on the last layer, from the CLS (row 0) token
    @pl.when(l == pl.num_programs(1) - 1)
    def _():
        x_cls = out.reshape(Bt, S, D)[:, 0:1, :].reshape(Bt, D)
        logits_ref[...] = (
            jnp.dot(x_cls.astype(jnp.bfloat16), wc_ref[...],
                    preferred_element_type=jnp.float32) + bc_ref[...]
        ).astype(logits_ref.dtype)


# --------------------------------------------------------------------------
# pallas_call wrapper
# --------------------------------------------------------------------------
def _vmem_limit_bytes():
    # ~48 MiB on 64-MiB-VMEM parts, ~96-100 MiB on 128-MiB parts.
    try:
        cap = pltpu.get_tpu_info().vmem_capacity_bytes
    except Exception:
        cap = 128 * 1024 * 1024
    return int(min(100 * 1024 * 1024, cap * 3 // 4))


def run_encoder_stack_and_classify(x, mask_bias, p, num_heads, batch_block=None):
    B, S, D = x.shape
    L, _, threeD = p['wqkv'].shape
    F = p['w1'].shape[-1]
    NV, VP = p['vec'].shape[1], p['vec'].shape[2]
    CP = p['wc_p'].shape[-1]

    # batch block: whole batch at small sizes; for prod, pick Bt (multiple of 8
    # or == B) so Bt*S fills the MXU M dim and weights are re-DMA'd B/Bt times.
    Bt = batch_block if batch_block is not None else B
    assert B % Bt == 0

    act_map = lambda b, l: (b, 0, 0)
    w_map = lambda b, l: (l, 0, 0)
    c2 = lambda b, l: (0, 0)

    in_specs = [
        pl.BlockSpec((Bt, S, D), act_map),             # x seed (bf16)
        pl.BlockSpec((Bt, 1, S), act_map),             # additive key-mask bias
        pl.BlockSpec((None, D, threeD), w_map),        # wqkv (bf16, head-interleaved)
        pl.BlockSpec((None, D, D), w_map),             # wo   (bf16)
        pl.BlockSpec((None, D, F), w_map),             # w1   (bf16)
        pl.BlockSpec((None, F, D), w_map),             # w2   (bf16)
        pl.BlockSpec((None, NV, VP), w_map),           # packed per-layer vectors
        pl.BlockSpec((D, CP), c2),                     # classifier weight (bf16)
        pl.BlockSpec((1, CP), c2),                     # classifier bias (f32)
    ]
    out_specs = (
        pl.BlockSpec((Bt, S, D), act_map),             # resident activation (bf16)
        pl.BlockSpec((Bt, CP), lambda b, l: (b, 0)),   # lane-padded logits
    )
    out_shape = (
        jax.ShapeDtypeStruct((B, S, D), jnp.bfloat16),
        jax.ShapeDtypeStruct((B, CP), jnp.float32),
    )

    _, logits = pl.pallas_call(
        functools.partial(encoder_stack_kernel, num_heads),
        out_shape=out_shape,
        grid=(B // Bt, L),                             # batch parallel, layers sequential
        in_specs=in_specs,
        out_specs=out_specs,
        compiler_params=pltpu.CompilerParams(
            dimension_semantics=("parallel", "arbitrary"),
            vmem_limit_bytes=_vmem_limit_bytes()),
    )(x, mask_bias, p['wqkv'], p['wo'], p['w1'], p['w2'], p['vec'],
      p['wc_p'], p['bc_p'])
    return logits


# --------------------------------------------------------------------------
# Model glue (embedding, pos-encoding, param init, forward)
# --------------------------------------------------------------------------
def sinusoidal_pe(max_len, d_model):
    pos = jnp.arange(max_len, dtype=jnp.float32)[:, None]
    i = jnp.arange(0, d_model, 2, dtype=jnp.float32)
    div = jnp.exp(-math.log(10000.0) * i / d_model)
    pe = jnp.zeros((max_len, d_model), jnp.float32)
    pe = pe.at[:, 0::2].set(jnp.sin(pos * div))
    pe = pe.at[:, 1::2].set(jnp.cos(pos * div))
    return pe


def init_params(key, vocab_size, d_model, max_len, n_layers, num_heads, d_ff,
                num_classes):
    std = 0.02
    H = num_heads
    dk = d_model // H
    assert H * dk == d_model
    keys = jax.random.split(key, 8)

    def nrm(k, shape):
        return std * jax.random.normal(k, shape, dtype=jnp.float32)

    wq = nrm(keys[0], (n_layers, d_model, d_model))
    wk = nrm(keys[1], (n_layers, d_model, d_model))
    wv = nrm(keys[2], (n_layers, d_model, d_model))
    wo = nrm(keys[3], (n_layers, d_model, d_model))
    w1 = nrm(keys[4], (n_layers, d_model, d_ff))
    w2 = nrm(keys[5], (n_layers, d_ff, d_model))
    wc = nrm(keys[7], (d_model, num_classes))

    # fused QKV weight with per-head-interleaved columns: [q_h0|k_h0|v_h0|q_h1|...]
    def hcols(w):
        return w.reshape(n_layers, d_model, H, dk)
    wqkv = jnp.stack([hcols(wq), hcols(wk), hcols(wv)], axis=3)   # (L, D, H, 3, dk)
    wqkv = wqkv.reshape(n_layers, d_model, 3 * d_model)

    # packed per-layer vectors: rows = [bqkv, bo, ln1_g, ln1_b, b1, b2, ln2_g, ln2_b]
    vpad = ((max(3 * d_model, d_ff) + 127) // 128) * 128
    vec = jnp.zeros((n_layers, 8, vpad), jnp.float32)
    vec = vec.at[:, 2, :d_model].set(1.0)   # ln1 gamma
    vec = vec.at[:, 6, :d_model].set(1.0)   # ln2 gamma
    # biases / ln betas stay zero (row 0 = QKV bias in interleaved column order)

    # classifier, lane-padded to 128 columns for an unmasked store
    cp = ((num_classes + 127) // 128) * 128
    wc_p = jnp.zeros((d_model, cp), jnp.bfloat16).at[:, :num_classes].set(
        wc.astype(jnp.bfloat16))
    bc_p = jnp.zeros((1, cp), jnp.float32)

    return {
        'emb': nrm(keys[6], (vocab_size, d_model)),
        'pe': sinusoidal_pe(max_len, d_model),
        'wqkv': wqkv.astype(jnp.bfloat16),
        'wo': wo.astype(jnp.bfloat16),
        'w1': w1.astype(jnp.bfloat16),
        'w2': w2.astype(jnp.bfloat16),
        'vec': vec,
        'wc_p': wc_p,
        'bc_p': bc_p,
    }


def transformer_classifier(input_ids, attention_mask, params, num_heads,
                           num_classes):
    d_model = params['emb'].shape[1]
    S = input_ids.shape[1]
    # InputEmbedding: lookup scaled by sqrt(d_model); PositionalEncoding: add table.
    x = params['emb'][input_ids] * math.sqrt(d_model)
    x = (x + params['pe'][:S][None]).astype(jnp.bfloat16)
    # additive key-mask bias, computed once: 0 where attended, -1e9 where padded
    mask_bias = (attention_mask.astype(jnp.float32) - 1.0)[:, None, :] * 1e9
    logits_padded = run_encoder_stack_and_classify(x, mask_bias, params, num_heads)
    return logits_padded[:, :num_classes]


# --------------------------------------------------------------------------
if __name__ == "__main__":
    vocab_size, d_model, max_len = 50, 32, 16
    n_layers, num_heads, d_ff, num_classes = 2, 4, 64, 2
    B, S = 2, 8

    key = jax.random.PRNGKey(0)
    k_param, k_ids = jax.random.split(key)
    params = init_params(k_param, vocab_size, d_model, max_len,
                         n_layers, num_heads, d_ff, num_classes)

    input_ids = jax.random.randint(k_ids, (B, S), 0, vocab_size, dtype=jnp.int32)
    attention_mask = jnp.array([[1, 1, 1, 1, 1, 1, 1, 1],
                                [1, 1, 1, 1, 1, 1, 0, 0]], dtype=jnp.int32)

    logits = transformer_classifier(input_ids, attention_mask, params,
                                    num_heads, num_classes)
    jax.block_until_ready(logits)
    assert logits.shape == (B, num_classes)
    print("KERNEL_OK")
</pallas_src>

<mosaic_0001>
module attributes {stable_mosaic.version = 11 : i64} {
  func.func @encoder_stack_kernel(%arg0: i32, %arg1: i32, %arg2: memref<2x8x32xbf16, #tpu.memory_space<vmem>>, %arg3: memref<2x1x8xf32, #tpu.memory_space<vmem>>, %arg4: memref<1x32x96xbf16, #tpu.memory_space<vmem>>, %arg5: memref<1x32x32xbf16, #tpu.memory_space<vmem>>, %arg6: memref<1x32x64xbf16, #tpu.memory_space<vmem>>, %arg7: memref<1x64x32xbf16, #tpu.memory_space<vmem>>, %arg8: memref<1x8x128xf32, #tpu.memory_space<vmem>>, %arg9: memref<32x128xbf16, #tpu.memory_space<vmem>>, %arg10: memref<1x128xf32, #tpu.memory_space<vmem>>, %arg11: memref<2x8x32xbf16, #tpu.memory_space<vmem>>, %arg12: memref<2x128xf32, #tpu.memory_space<vmem>>) attributes {dimension_semantics = [#tpu.dimension_semantics<parallel>, #tpu.dimension_semantics<arbitrary>], iteration_bounds = array<i64: 1, 2>, scalar_prefetch = 0 : i64, scratch_operands = 0 : i64, tpu.core_type = #tpu.core_type<tc>, window_params = [{transform_indices = @transform_0, window_bounds = array<i64: 2, 8, 32>}, {transform_indices = @transform_1, window_bounds = array<i64: 2, 1, 8>}, {transform_indices = @transform_2, window_bounds = array<i64: 1, 32, 96>}, {transform_indices = @transform_3, window_bounds = array<i64: 1, 32, 32>}, {transform_indices = @transform_4, window_bounds = array<i64: 1, 32, 64>}, {transform_indices = @transform_5, window_bounds = array<i64: 1, 64, 32>}, {transform_indices = @transform_6, window_bounds = array<i64: 1, 8, 128>}, {pipeline_mode = #tpu.pipeline_mode<synchronous>, transform_indices = @transform_7, window_bounds = array<i64: 32, 128>}, {pipeline_mode = #tpu.pipeline_mode<synchronous>, transform_indices = @transform_8, window_bounds = array<i64: 1, 128>}, {transform_indices = @transform_9, window_bounds = array<i64: 2, 8, 32>}, {transform_indices = @transform_10, window_bounds = array<i64: 2, 128>}]} {
    %c0_i32 = arith.constant 0 : i32
    %0 = arith.cmpi eq, %arg1, %c0_i32 : i32
    %1 = arith.extui %0 : i1 to i32
    %c0_i32_0 = arith.constant 0 : i32
    %2 = arith.cmpi ne, %1, %c0_i32_0 : i32
    scf.if %2 {
      %c0_44 = arith.constant 0 : index
      %c0_45 = arith.constant 0 : index
      %c0_46 = arith.constant 0 : index
      %147 = vector.load %arg2[%c0_44, %c0_45, %c0_46] : memref<2x8x32xbf16, #tpu.memory_space<vmem>>, vector<2x8x32xbf16>
      %c0_47 = arith.constant 0 : index
      %c0_48 = arith.constant 0 : index
      %c0_49 = arith.constant 0 : index
      %148 = vector.load %arg11[%c0_47, %c0_48, %c0_49] : memref<2x8x32xbf16, #tpu.memory_space<vmem>>, vector<2x8x32xbf16>
      tpu.vector_store %arg11[%c0_47, %c0_48, %c0_49], %147 {strides = array<i32>} : memref<2x8x32xbf16, #tpu.memory_space<vmem>>, vector<2x8x32xbf16>,
    } else {
    }
    %c0 = arith.constant 0 : index
    %c0_1 = arith.constant 0 : index
    %c0_2 = arith.constant 0 : index
    %3 = vector.load %arg8[%c0, %c0_1, %c0_2] : memref<1x8x128xf32, #tpu.memory_space<vmem>>, vector<1x8x128xf32>
    %4 = vector.shape_cast %3 : vector<1x8x128xf32> to vector<8x128xf32>
    %5 = vector.extract_strided_slice %4 {offsets = [0, 0], sizes = [1, 96], strides = [1, 1]} : vector<8x128xf32> to vector<1x96xf32>
    %6 = vector.extract_strided_slice %4 {offsets = [1, 0], sizes = [1, 32], strides = [1, 1]} : vector<8x128xf32> to vector<1x32xf32>
    %7 = vector.extract_strided_slice %4 {offsets = [2, 0], sizes = [1, 32], strides = [1, 1]} : vector<8x128xf32> to vector<1x32xf32>
    %8 = vector.extract_strided_slice %4 {offsets = [3, 0], sizes = [1, 32], strides = [1, 1]} : vector<8x128xf32> to vector<1x32xf32>
    %9 = vector.extract_strided_slice %4 {offsets = [4, 0], sizes = [1, 64], strides = [1, 1]} : vector<8x128xf32> to vector<1x64xf32>
    %10 = vector.extract_strided_slice %4 {offsets = [5, 0], sizes = [1, 32], strides = [1, 1]} : vector<8x128xf32> to vector<1x32xf32>
    %11 = vector.extract_strided_slice %4 {offsets = [6, 0], sizes = [1, 32], strides = [1, 1]} : vector<8x128xf32> to vector<1x32xf32>
    %12 = vector.extract_strided_slice %4 {offsets = [7, 0], sizes = [1, 32], strides = [1, 1]} : vector<8x128xf32> to vector<1x32xf32>
    %c0_3 = arith.constant 0 : index
    %c0_4 = arith.constant 0 : index
    %c0_5 = arith.constant 0 : index
    %13 = vector.load %arg11[%c0_3, %c0_4, %c0_5] : memref<2x8x32xbf16, #tpu.memory_space<vmem>>, vector<2x8x32xbf16>
    %14 = arith.extf %13 : vector<2x8x32xbf16> to vector<2x8x32xf32>
    %15 = vector.shape_cast %14 : vector<2x8x32xf32> to vector<16x32xf32>
    %16 = vector.shape_cast %13 : vector<2x8x32xbf16> to vector<16x32xbf16>
    %c0_6 = arith.constant 0 : index
    %c0_7 = arith.constant 0 : index
    %c0_8 = arith.constant 0 : index
    %17 = vector.load %arg4[%c0_6, %c0_7, %c0_8] : memref<1x32x96xbf16, #tpu.memory_space<vmem>>, vector<1x32x96xbf16>
    %18 = vector.shape_cast %17 : vector<1x32x96xbf16> to vector<32x96xbf16>
    %cst = arith.constant dense<0.000000e+00> : vector<16x96xf32>
    %19 = tpu.matmul %16, %18, %cst {dimension_numbers = #tpu.dot_dimension_numbers<[1], [0], [0], [1], [0, 0, 1, 1], [], []>} : vector<16x32xbf16>, vector<32x96xbf16>, vector<16x96xf32> -> vector<16x96xf32>
    %20 = vector.broadcast %5 : vector<1x96xf32> to vector<16x96xf32>
    %21 = arith.addf %19, %20 : vector<16x96xf32>
    %22 = arith.truncf %21 : vector<16x96xf32> to vector<16x96xbf16>
    %23 = vector.extract_strided_slice %22 {offsets = [0, 0], sizes = [16, 24], strides = [1, 1]} : vector<16x96xbf16> to vector<16x24xbf16>
    %24 = vector.shape_cast %23 : vector<16x24xbf16> to vector<2x8x24xbf16>
    %25 = vector.extract_strided_slice %22 {offsets = [0, 24], sizes = [16, 24], strides = [1, 1]} : vector<16x96xbf16> to vector<16x24xbf16>
    %26 = vector.shape_cast %25 : vector<16x24xbf16> to vector<2x8x24xbf16>
    %27 = vector.extract_strided_slice %22 {offsets = [0, 48], sizes = [16, 24], strides = [1, 1]} : vector<16x96xbf16> to vector<16x24xbf16>
    %28 = vector.shape_cast %27 : vector<16x24xbf16> to vector<2x8x24xbf16>
    %29 = vector.extract_strided_slice %22 {offsets = [0, 72], sizes = [16, 24], strides = [1, 1]} : vector<16x96xbf16> to vector<16x24xbf16>
    %30 = vector.shape_cast %29 : vector<16x24xbf16> to vector<2x8x24xbf16>
    %31 = vector.shape_cast %24 : vector<2x8x24xbf16> to vector<1x2x8x24xbf16>
    %32 = vector.shape_cast %26 : vector<2x8x24xbf16> to vector<1x2x8x24xbf16>
    %33 = vector.shape_cast %28 : vector<2x8x24xbf16> to vector<1x2x8x24xbf16>
    %34 = vector.shape_cast %30 : vector<2x8x24xbf16> to vector<1x2x8x24xbf16>
    %35 = tpu.concatenate %31, %32, %33, %34 in 0 : vector<1x2x8x24xbf16>, vector<1x2x8x24xbf16>, vector<1x2x8x24xbf16>, vector<1x2x8x24xbf16> -> vector<4x2x8x24xbf16>
    %36 = vector.shape_cast %35 : vector<4x2x8x24xbf16> to vector<8x8x24xbf16>
    %37 = vector.extract_strided_slice %36 {offsets = [0, 0, 0], sizes = [8, 8, 8], strides = [1, 1, 1]} : vector<8x8x24xbf16> to vector<8x8x8xbf16>
    %38 = vector.extract_strided_slice %36 {offsets = [0, 0, 8], sizes = [8, 8, 8], strides = [1, 1, 1]} : vector<8x8x24xbf16> to vector<8x8x8xbf16>
    %39 = vector.extract_strided_slice %36 {offsets = [0, 0, 16], sizes = [8, 8, 8], strides = [1, 1, 1]} : vector<8x8x24xbf16> to vector<8x8x8xbf16>
    "tpu.trace_start"() <{level = 10 : i32, message = "gqd,gkd->gqk"}> : () -> ()
    %cst_9 = arith.constant dense<0.000000e+00> : vector<8x8x8xf32>
    %40 = tpu.matmul %37, %38, %cst_9 {dimension_numbers = #tpu.dot_dimension_numbers<[2], [2], [1], [1], [0, 0, 0, 1, 1, 1], [0], [0]>} : vector<8x8x8xbf16>, vector<8x8x8xbf16>, vector<8x8x8xf32> -> vector<8x8x8xf32>
    "tpu.trace_stop"() : () -> ()
    %cst_10 = arith.constant 0.353553385 : f32
    %41 = vector.broadcast %cst_10 : f32 to vector<8x8x8xf32>
    %42 = arith.mulf %40, %41 : vector<8x8x8xf32>
    %c0_11 = arith.constant 0 : index
    %c0_12 = arith.constant 0 : index
    %c0_13 = arith.constant 0 : index
    %43 = vector.load %arg3[%c0_11, %c0_12, %c0_13] : memref<2x1x8xf32, #tpu.memory_space<vmem>>, vector<2x1x8xf32>
    %44 = vector.shape_cast %43 : vector<2x1x8xf32> to vector<1x2x1x8xf32>
    %45 = vector.shape_cast %44 : vector<1x2x1x8xf32> to vector<1x2x1x8xf32>
    %46 = vector.broadcast %45 : vector<1x2x1x8xf32> to vector<4x2x1x8xf32>
    %47 = vector.shape_cast %46 : vector<4x2x1x8xf32> to vector<8x1x8xf32>
    %48 = vector.broadcast %47 : vector<8x1x8xf32> to vector<8x8x8xf32>
    %49 = arith.addf %42, %48 : vector<8x8x8xf32>
    %cst_14 = arith.constant dense<0xFF800000> : vector<8x8xf32>
    %50 = vector.multi_reduction <maximumf>, %49, %cst_14 [2] : vector<8x8x8xf32> to vector<8x8xf32>
    %51 = vector.shape_cast %50 : vector<8x8xf32> to vector<8x8x1xf32>
    %52 = vector.broadcast %51 : vector<8x8x1xf32> to vector<8x8x8xf32>
    %53 = arith.subf %49, %52 : vector<8x8x8xf32>
    %54 = math.exp %53 : vector<8x8x8xf32>
    %cst_15 = arith.constant dense<0.000000e+00> : vector<8x8xf32>
    %55 = vector.multi_reduction <add>, %54, %cst_15 [2] : vector<8x8x8xf32> to vector<8x8xf32>
    %56 = vector.shape_cast %55 : vector<8x8xf32> to vector<8x8x1xf32>
    %57 = vector.broadcast %56 : vector<8x8x1xf32> to vector<8x8x8xf32>
    %58 = arith.divf %54, %57 : vector<8x8x8xf32>
    %59 = arith.truncf %58 : vector<8x8x8xf32> to vector<8x8x8xbf16>
    "tpu.trace_start"() <{level = 10 : i32, message = "gqk,gkd->gqd"}> : () -> ()
    %cst_16 = arith.constant dense<0.000000e+00> : vector<8x8x8xf32>
    %60 = tpu.matmul %59, %39, %cst_16 {dimension_numbers = #tpu.dot_dimension_numbers<[2], [1], [1], [2], [0, 0, 0, 1, 1, 2], [0], [0]>} : vector<8x8x8xbf16>, vector<8x8x8xbf16>, vector<8x8x8xf32> -> vector<8x8x8xf32>
    "tpu.trace_stop"() : () -> ()
    %61 = arith.truncf %60 : vector<8x8x8xf32> to vector<8x8x8xbf16>
    %62 = vector.shape_cast %61 : vector<8x8x8xbf16> to vector<4x2x8x8xbf16>
    %63 = vector.extract_strided_slice %62 {offsets = [0, 0, 0, 0], sizes = [1, 2, 8, 8], strides = [1, 1, 1, 1]} : vector<4x2x8x8xbf16> to vector<1x2x8x8xbf16>
    %64 = vector.shape_cast %63 : vector<1x2x8x8xbf16> to vector<2x8x8xbf16>
    %65 = vector.shape_cast %64 : vector<2x8x8xbf16> to vector<16x8xbf16>
    %66 = vector.extract_strided_slice %62 {offsets = [1, 0, 0, 0], sizes = [1, 2, 8, 8], strides = [1, 1, 1, 1]} : vector<4x2x8x8xbf16> to vector<1x2x8x8xbf16>
    %67 = vector.shape_cast %66 : vector<1x2x8x8xbf16> to vector<2x8x8xbf16>
    %68 = vector.shape_cast %67 : vector<2x8x8xbf16> to vector<16x8xbf16>
    %69 = vector.extract_strided_slice %62 {offsets = [2, 0, 0, 0], sizes = [1, 2, 8, 8], strides = [1, 1, 1, 1]} : vector<4x2x8x8xbf16> to vector<1x2x8x8xbf16>
    %70 = vector.shape_cast %69 : vector<1x2x8x8xbf16> to vector<2x8x8xbf16>
    %71 = vector.shape_cast %70 : vector<2x8x8xbf16> to vector<16x8xbf16>
    %72 = vector.extract_strided_slice %62 {offsets = [3, 0, 0, 0], sizes = [1, 2, 8, 8], strides = [1, 1, 1, 1]} : vector<4x2x8x8xbf16> to vector<1x2x8x8xbf16>
    %73 = vector.shape_cast %72 : vector<1x2x8x8xbf16> to vector<2x8x8xbf16>
    %74 = vector.shape_cast %73 : vector<2x8x8xbf16> to vector<16x8xbf16>
    %75 = tpu.concatenate %65, %68, %71, %74 in 1 : vector<16x8xbf16>, vector<16x8xbf16>, vector<16x8xbf16>, vector<16x8xbf16> -> vector<16x32xbf16>
    %c0_17 = arith.constant 0 : index
    %c0_18 = arith.constant 0 : index
    %c0_19 = arith.constant 0 : index
    %76 = vector.load %arg5[%c0_17, %c0_18, %c0_19] : memref<1x32x32xbf16, #tpu.memory_space<vmem>>, vector<1x32x32xbf16>
    %77 = vector.shape_cast %76 : vector<1x32x32xbf16> to vector<32x32xbf16>
    %cst_20 = arith.constant dense<0.000000e+00> : vector<16x32xf32>
    %78 = tpu.matmul %75, %77, %cst_20 {dimension_numbers = #tpu.dot_dimension_numbers<[1], [0], [0], [1], [0, 0, 1, 1], [], []>} : vector<16x32xbf16>, vector<32x32xbf16>, vector<16x32xf32> -> vector<16x32xf32>
    %79 = vector.broadcast %6 : vector<1x32xf32> to vector<16x32xf32>
    %80 = arith.addf %78, %79 : vector<16x32xf32>
    %81 = arith.addf %15, %80 : vector<16x32xf32>
    %cst_21 = arith.constant dense<0.000000e+00> : vector<16xf32>
    %82 = vector.multi_reduction <add>, %81, %cst_21 [1] : vector<16x32xf32> to vector<16xf32>
    %83 = vector.shape_cast %82 : vector<16xf32> to vector<16x1xf32>
    %cst_22 = arith.constant 3.200000e+01 : f32
    %84 = vector.broadcast %cst_22 : f32 to vector<16x1xf32>
    %85 = arith.divf %83, %84 : vector<16x1xf32>
    %86 = vector.broadcast %85 : vector<16x1xf32> to vector<16x32xf32>
    %87 = arith.subf %81, %86 : vector<16x32xf32>
    %88 = arith.mulf %87, %87 : vector<16x32xf32>
    %cst_23 = arith.constant dense<0.000000e+00> : vector<16xf32>
    %89 = vector.multi_reduction <add>, %88, %cst_23 [1] : vector<16x32xf32> to vector<16xf32>
    %90 = vector.shape_cast %89 : vector<16xf32> to vector<16x1xf32>
    %cst_24 = arith.constant 3.200000e+01 : f32
    %91 = vector.broadcast %cst_24 : f32 to vector<16x1xf32>
    %92 = arith.divf %90, %91 : vector<16x1xf32>
    %93 = vector.broadcast %85 : vector<16x1xf32> to vector<16x32xf32>
    %94 = arith.subf %81, %93 : vector<16x32xf32>
    %cst_25 = arith.constant 9.99999974E-6 : f32
    %95 = vector.broadcast %cst_25 : f32 to vector<16x1xf32>
    %96 = arith.addf %92, %95 : vector<16x1xf32>
    %97 = math.rsqrt %96 : vector<16x1xf32>
    %98 = vector.broadcast %97 : vector<16x1xf32> to vector<16x32xf32>
    %99 = arith.mulf %94, %98 : vector<16x32xf32>
    %100 = vector.broadcast %7 : vector<1x32xf32> to vector<16x32xf32>
    %101 = arith.mulf %99, %100 : vector<16x32xf32>
    %102 = vector.broadcast %8 : vector<1x32xf32> to vector<16x32xf32>
    %103 = arith.addf %101, %102 : vector<16x32xf32>
    %104 = arith.truncf %103 : vector<16x32xf32> to vector<16x32xbf16>
    %c0_26 = arith.constant 0 : index
    %c0_27 = arith.constant 0 : index
    %c0_28 = arith.constant 0 : index
    %105 = vector.load %arg6[%c0_26, %c0_27, %c0_28] : memref<1x32x64xbf16, #tpu.memory_space<vmem>>, vector<1x32x64xbf16>
    %106 = vector.shape_cast %105 : vector<1x32x64xbf16> to vector<32x64xbf16>
    %cst_29 = arith.constant dense<0.000000e+00> : vector<16x64xf32>
    %107 = tpu.matmul %104, %106, %cst_29 {dimension_numbers = #tpu.dot_dimension_numbers<[1], [0], [0], [1], [0, 0, 1, 1], [], []>} : vector<16x32xbf16>, vector<32x64xbf16>, vector<16x64xf32> -> vector<16x64xf32>
    %108 = vector.broadcast %9 : vector<1x64xf32> to vector<16x64xf32>
    %109 = arith.addf %107, %108 : vector<16x64xf32>
    %cst_30 = arith.constant 0.000000e+00 : f32
    %110 = vector.broadcast %cst_30 : f32 to vector<16x64xf32>
    %111 = arith.maximumf %109, %110 : vector<16x64xf32>
    %112 = arith.truncf %111 : vector<16x64xf32> to vector<16x64xbf16>
    %c0_31 = arith.constant 0 : index
    %c0_32 = arith.constant 0 : index
    %c0_33 = arith.constant 0 : index
    %113 = vector.load %arg7[%c0_31, %c0_32, %c0_33] : memref<1x64x32xbf16, #tpu.memory_space<vmem>>, vector<1x64x32xbf16>
    %114 = vector.shape_cast %113 : vector<1x64x32xbf16> to vector<64x32xbf16>
    %cst_34 = arith.constant dense<0.000000e+00> : vector<16x32xf32>
    %115 = tpu.matmul %112, %114, %cst_34 {dimension_numbers = #tpu.dot_dimension_numbers<[1], [0], [0], [1], [0, 0, 1, 1], [], []>} : vector<16x64xbf16>, vector<64x32xbf16>, vector<16x32xf32> -> vector<16x32xf32>
    %116 = vector.broadcast %10 : vector<1x32xf32> to vector<16x32xf32>
    %117 = arith.addf %115, %116 : vector<16x32xf32>
    %118 = arith.addf %103, %117 : vector<16x32xf32>
    %cst_35 = arith.constant dense<0.000000e+00> : vector<16xf32>
    %119 = vector.multi_reduction <add>, %118, %cst_35 [1] : vector<16x32xf32> to vector<16xf32>
    %120 = vector.shape_cast %119 : vector<16xf32> to vector<16x1xf32>
    %cst_36 = arith.constant 3.200000e+01 : f32
    %121 = vector.broadcast %cst_36 : f32 to vector<16x1xf32>
    %122 = arith.divf %120, %121 : vector<16x1xf32>
    %123 = vector.broadcast %122 : vector<16x1xf32> to vector<16x32xf32>
    %124 = arith.subf %118, %123 : vector<16x32xf32>
    %125 = arith.mulf %124, %124 : vector<16x32xf32>
    %cst_37 = arith.constant dense<0.000000e+00> : vector<16xf32>
    %126 = vector.multi_reduction <add>, %125, %cst_37 [1] : vector<16x32xf32> to vector<16xf32>
    %127 = vector.shape_cast %126 : vector<16xf32> to vector<16x1xf32>
    %cst_38 = arith.constant 3.200000e+01 : f32
    %128 = vector.broadcast %cst_38 : f32 to vector<16x1xf32>
    %129 = arith.divf %127, %128 : vector<16x1xf32>
    %130 = vector.broadcast %122 : vector<16x1xf32> to vector<16x32xf32>
    %131 = arith.subf %118, %130 : vector<16x32xf32>
    %cst_39 = arith.constant 9.99999974E-6 : f32
    %132 = vector.broadcast %cst_39 : f32 to vector<16x1xf32>
    %133 = arith.addf %129, %132 : vector<16x1xf32>
    %134 = math.rsqrt %133 : vector<16x1xf32>
    %135 = vector.broadcast %134 : vector<16x1xf32> to vector<16x32xf32>
    %136 = arith.mulf %131, %135 : vector<16x32xf32>
    %137 = vector.broadcast %11 : vector<1x32xf32> to vector<16x32xf32>
    %138 = arith.mulf %136, %137 : vector<16x32xf32>
    %139 = vector.broadcast %12 : vector<1x32xf32> to vector<16x32xf32>
    %140 = arith.addf %138, %139 : vector<16x32xf32>
    %141 = vector.shape_cast %140 : vector<16x32xf32> to vector<2x8x32xf32>
    %142 = arith.truncf %141 : vector<2x8x32xf32> to vector<2x8x32xbf16>
    %c0_40 = arith.constant 0 : index
    %c0_41 = arith.constant 0 : index
    %c0_42 = arith.constant 0 : index
    %143 = vector.load %arg11[%c0_40, %c0_41, %c0_42] : memref<2x8x32xbf16, #tpu.memory_space<vmem>>, vector<2x8x32xbf16>
    tpu.vector_store %arg11[%c0_40, %c0_41, %c0_42], %142 {strides = array<i32>} : memref<2x8x32xbf16, #tpu.memory_space<vmem>>, vector<2x8x32xbf16>,
    %c1_i32 = arith.constant 1 : i32
    %144 = arith.cmpi eq, %arg1, %c1_i32 : i32
    %145 = arith.extui %144 : i1 to i32
    %c0_i32_43 = arith.constant 0 : i32
    %146 = arith.cmpi ne, %145, %c0_i32_43 : i32
    scf.if %146 {
      %147 = vector.shape_cast %140 : vector<16x32xf32> to vector<2x8x32xf32>
      %148 = vector.extract_strided_slice %147 {offsets = [0, 0, 0], sizes = [2, 1, 32], strides = [1, 1, 1]} : vector<2x8x32xf32> to vector<2x1x32xf32>
      %149 = vector.shape_cast %148 : vector<2x1x32xf32> to vector<2x32xf32>
      %150 = arith.truncf %149 : vector<2x32xf32> to vector<2x32xbf16>
      %c0_44 = arith.constant 0 : index
      %c0_45 = arith.constant 0 : index
      %151 = vector.load %arg9[%c0_44, %c0_45] : memref<32x128xbf16, #tpu.memory_space<vmem>>, vector<32x128xbf16>
      %cst_46 = arith.constant dense<0.000000e+00> : vector<2x128xf32>
      %152 = tpu.matmul %150, %151, %cst_46 {dimension_numbers = #tpu.dot_dimension_numbers<[1], [0], [0], [1], [0, 0, 1, 1], [], []>} : vector<2x32xbf16>, vector<32x128xbf16>, vector<2x128xf32> -> vector<2x128xf32>
      %c0_47 = arith.constant 0 : index
      %c0_48 = arith.constant 0 : index
      %153 = vector.load %arg10[%c0_47, %c0_48] : memref<1x128xf32, #tpu.memory_space<vmem>>, vector<1x128xf32>
      %154 = vector.broadcast %153 : vector<1x128xf32> to vector<2x128xf32>
      %155 = arith.addf %152, %154 : vector<2x128xf32>
      %c0_49 = arith.constant 0 : index
      %c0_50 = arith.constant 0 : index
      %156 = vector.load %arg12[%c0_49, %c0_50] : memref<2x128xf32, #tpu.memory_space<vmem>>, vector<2x128xf32>
      tpu.vector_store %arg12[%c0_49, %c0_50], %155 {strides = array<i32>} : memref<2x128xf32, #tpu.memory_space<vmem>>, vector<2x128xf32>,
    } else {
    }
    return
  }
  func.func @transform_0(%arg0: i32, %arg1: i32) -> (i32, i32, i32) {
    %c0_i32 = arith.constant 0 : i32
    %c0_i32_0 = arith.constant 0 : i32
    %c0_i32_1 = arith.constant 0 : i32
    return %arg0, %c0_i32, %c0_i32_0 : i32, i32, i32
  }
  func.func @transform_1(%arg0: i32, %arg1: i32) -> (i32, i32, i32) {
    %c0_i32 = arith.constant 0 : i32
    %c0_i32_0 = arith.constant 0 : i32
    %c0_i32_1 = arith.constant 0 : i32
    return %arg0, %c0_i32, %c0_i32_0 : i32, i32, i32
  }
  func.func @transform_2(%arg0: i32, %arg1: i32) -> (i32, i32, i32) {
    %c0_i32 = arith.constant 0 : i32
    %c0_i32_0 = arith.constant 0 : i32
    %c0_i32_1 = arith.constant 0 : i32
    return %arg1, %c0_i32, %c0_i32_0 : i32, i32, i32
  }
  func.func @transform_3(%arg0: i32, %arg1: i32) -> (i32, i32, i32) {
    %c0_i32 = arith.constant 0 : i32
    %c0_i32_0 = arith.constant 0 : i32
    %c0_i32_1 = arith.constant 0 : i32
    return %arg1, %c0_i32, %c0_i32_0 : i32, i32, i32
  }
  func.func @transform_4(%arg0: i32, %arg1: i32) -> (i32, i32, i32) {
    %c0_i32 = arith.constant 0 : i32
    %c0_i32_0 = arith.constant 0 : i32
    %c0_i32_1 = arith.constant 0 : i32
    return %arg1, %c0_i32, %c0_i32_0 : i32, i32, i32
  }
  func.func @transform_5(%arg0: i32, %arg1: i32) -> (i32, i32, i32) {
    %c0_i32 = arith.constant 0 : i32
    %c0_i32_0 = arith.constant 0 : i32
    %c0_i32_1 = arith.constant 0 : i32
    return %arg1, %c0_i32, %c0_i32_0 : i32, i32, i32
  }
  func.func @transform_6(%arg0: i32, %arg1: i32) -> (i32, i32, i32) {
    %c0_i32 = arith.constant 0 : i32
    %c0_i32_0 = arith.constant 0 : i32
    %c0_i32_1 = arith.constant 0 : i32
    return %arg1, %c0_i32, %c0_i32_0 : i32, i32, i32
  }
  func.func @transform_7(%arg0: i32, %arg1: i32) -> (i32, i32) {
    %c0_i32 = arith.constant 0 : i32
    %c0_i32_0 = arith.constant 0 : i32
    %c0_i32_1 = arith.constant 0 : i32
    return %c0_i32, %c0_i32_0 : i32, i32
  }
  func.func @transform_8(%arg0: i32, %arg1: i32) -> (i32, i32) {
    %c0_i32 = arith.constant 0 : i32
    %c0_i32_0 = arith.constant 0 : i32
    %c0_i32_1 = arith.constant 0 : i32
    return %c0_i32, %c0_i32_0 : i32, i32
  }
  func.func @transform_9(%arg0: i32, %arg1: i32) -> (i32, i32, i32) {
    %c0_i32 = arith.constant 0 : i32
    %c0_i32_0 = arith.constant 0 : i32
    %c0_i32_1 = arith.constant 0 : i32
    return %arg0, %c0_i32, %c0_i32_0 : i32, i32, i32
  }
  func.func @transform_10(%arg0: i32, %arg1: i32) -> (i32, i32) {
    %c0_i32 = arith.constant 0 : i32
    %c0_i32_0 = arith.constant 0 : i32
    return %arg0, %c0_i32 : i32, i32
  }
}

</mosaic_0001>

<llo_original>
// kernel: tpu_custom_call.1
$region0: #{tpu_custom_call.1}
  #allocation0 [shape = 'u32[]', space=smem, size = 0x4, offset = 0x4, fixed_abs, tag = 'smem constant byte address 0x4 - core index']
  #allocation1 [shape = 'u32[144,128]{1,0:T(1,128)}', space=vmem, size = 0x12000, scoped, tag = 'internal scratch']
  %s0 = inlined_call_operand.hbm [shape: bf16[2,8,32], index: 0, kind: input, shape index: {}]
  %s1 = inlined_call_operand.hbm [shape: f32[2,1,8], index: 1, kind: input, shape index: {}]
  %s2 = inlined_call_operand.hbm [shape: bf16[2,32,96], index: 2, kind: input, shape index: {}]
  %s3 = inlined_call_operand.hbm [shape: bf16[2,32,32], index: 3, kind: input, shape index: {}]
  %s4 = inlined_call_operand.hbm [shape: bf16[2,32,64], index: 4, kind: input, shape index: {}]
  %s5 = inlined_call_operand.hbm [shape: bf16[2,64,32], index: 5, kind: input, shape index: {}]
  %s6 = inlined_call_operand.hbm [shape: f32[2,8,128], index: 6, kind: input, shape index: {}]
  %s7 = inlined_call_operand.hbm [shape: bf16[32,128], index: 7, kind: input, shape index: {}]
  %s8 = inlined_call_operand.hbm [shape: f32[1,128], index: 8, kind: input, shape index: {}]
  %s9 = inlined_call_operand.hbm [shape: bf16[2,8,32], index: 9, kind: output, shape index: {0}]
  %s10 = inlined_call_operand.hbm [shape: f32[2,128], index: 10, kind: output, shape index: {1}]
  %11 = xla_tuple %s9, %s10
  %s12 = sld [smem:[#allocation0]]
  $region121: #{tpu_custom_call.1} parent=0
    _
  %s14 = ssub.s32 1, %s12
  %s15 = scalar_select 0, %s14, %s12
  $region1: #{tpu_custom_call.1} parent=0
    #allocation2 [shape = 'u8[4096]{0}', space=vmem, size = 0x1000, scoped, tag = 'input window, operand 0, single buffered']
    #allocation3 [shape = 's32[2]{0}', space=sflag, size = 0x8, scoped, tag = 'scoped memory for tpu_custom_call.1']
    #allocation4 [shape = 's32[2]{0}', space=sflag, size = 0x8, scoped, tag = 'scoped memory for tpu_custom_call.1']
    #allocation5 [shape = 'u8[1024]{0}', space=vmem, size = 0x400, scoped, tag = 'input window, operand 1, single buffered']
    #allocation6 [shape = 's32[1]{0}', space=sflag, size = 0x4, scoped, tag = 'scoped memory for tpu_custom_call.1']
    #allocation7 [shape = 'u8[16384]{0}', space=vmem, size = 0x4000, scoped, tag = 'input window, operand 2']
    #allocation8 [shape = 'u8[16384]{0}', space=vmem, size = 0x4000, scoped, tag = 'input window, operand 3']
    #allocation9 [shape = 'u8[16384]{0}', space=vmem, size = 0x4000, scoped, tag = 'input window, operand 4']
    #allocation10 [shape = 'u8[32768]{0}', space=vmem, size = 0x8000, scoped, tag = 'input window, operand 5']
    #allocation11 [shape = 'u8[8192]{0}', space=vmem, size = 0x2000, scoped, tag = 'input window, operand 6']
    #allocation12 [shape = 'u8[8192]{0}', space=vmem, size = 0x2000, scoped, tag = 'input window, operand 7, single buffered']
    #allocation13 [shape = 'u8[512]{0}', space=vmem, size = 0x400, scoped, tag = 'input window, operand 8, single buffered']
    #allocation14 [shape = 's32[1]{0}', space=sflag, size = 0x4, scoped, tag = 'scoped memory for tpu_custom_call.1']
    #allocation15 [shape = 'u8[4096]{0}', space=vmem, size = 0x1000, scoped, tag = 'output window, operand 0, single buffered']
    #allocation16 [shape = 'u8[1024]{0}', space=vmem, size = 0x400, scoped, tag = 'output window, operand 1, single buffered']
    #allocation17 [shape = 's32[1]{0}', space=sflag, size = 0x4, scoped, tag = 'scoped memory for tpu_custom_call.1']
    %16 = vsyncpa [#allocation3], 0
    %17 = vsyncpa [#allocation6], 0
    %18 = vsyncpa [#allocation14], 0
    %19 = vsyncpa [#allocation4], 0
    %20 = vsyncpa [#allocation17], 0
    loop: start=0, step=1, limit=4
    $region2: #{tpu_custom_call.1} parent=1 // loop_pre_header
      _
    $region3: #{tpu_custom_call.1} parent=1 // loop_header
      %s22 = sphi 0, %s26
      %p23 = scmp.ge.s32.totalorder %s22, 4
      %s29 = sphi 0, %s41
      %s30 = sphi 0, %s37
      %s31 = sphi 0, %s29
      %s32 = sphi 0, %s30
      %s33 = sphi 0, %s31
      %s34 = sphi 0, %s32
      %s44 = sphi 0, %s46
      %s47 = sphi 0, %s44
      %s48 = sphi 0, %s47
      %s64 = sphi 0, %s48
      %s70 = sphi 0, %s72
      %s73 = sphi 0, %s70
      %s74 = sphi 0, %s73
      %s90 = sphi 0, %s74
      %s96 = sphi 0, %s98
      %s99 = sphi 0, %s96
      %s100 = sphi 0, %s99
      %s116 = sphi 0, %s100
      %s122 = sphi 0, %s124
      %s125 = sphi 0, %s122
      %s126 = sphi 0, %s125
      %s142 = sphi 0, %s126
      %s148 = sphi 0, %s150
      %s151 = sphi 0, %s148
      %s152 = sphi 0, %s151
      %s168 = sphi 0, %s152
      %s174 = sphi 0, %s176
      %s177 = sphi 0, %s174
      %s178 = sphi 0, %s177
      %s194 = sphi 0, %s178
      %s200 = sphi 0, %s202
      %s203 = sphi 0, %s200
      %s204 = sphi 0, %s203
      %s220 = sphi 0, %s204
      %s224 = sphi 0, %s224
      %s226 = sphi 0, %s224
      %s227 = sphi 0, %s226
      %s241 = sphi 0, %s227
      %s245 = sphi 0, %s245
      %s247 = sphi 0, %s245
      %s248 = sphi 0, %s247
      %s262 = sphi 0, %s248
      %s268 = sphi 0, %s270
      %s271 = sphi 0, %s268
      %s272 = sphi 0, %s271
      %s288 = sphi 0, %s272
      %s294 = sphi 0, %s296
      %s297 = sphi 0, %s294
      %s298 = sphi 0, %s297
      %s314 = sphi 0, %s298
    $region4: #{tpu_custom_call.1} parent=1 // loop_header_branch
      %25 = sbr.rel (%p23) target = $region8
    $region5: #{tpu_custom_call.1} parent=1 // loop_body
      %s27 = ssub.s32 %s22, 1
      %s28 = ssub.s32 %s22, 2
      %s35 = sadd.s32 1, %s30
      %p36 = scmp.ge.s32.totalorder %s35, 2
      %s37 = scalar_select %p36, 0, %s35
      %s38 = sadd.s32 1, %s29
      %s39 = scalar_select %p36, %s38, %s29
      %p40 = scmp.ge.s32.totalorder %s39, 1
      %s41 = scalar_select %p40, 0, %s39
      %s42 = ssub.s32 %s29, %s41
      %p43 = scmp.eq.s32.totalorder %s42, 0
      %s45 = sadd.s32 %s44, 1
      %s46 = scalar_select %p43, %s44, %s45
      %p49 = pneg %p43
      %p50 = scmp.eq.s32.totalorder %s22, 1
      %p51 = por %p49, %p50
      %p52 = scmp.ne.s32.totalorder %s44, %s47
      %p53 = scmp.eq.s32.totalorder %s22, 0
      %p54 = por %p52, %p53
      %p55 = scmp.ne.s32.totalorder %s44, %s47
      %p56 = scmp.eq.s32.totalorder %s27, 1
      %p57 = por %p55, %p56
      %p58 = scmp.ne.s32.totalorder %s47, %s48
      %p59 = scmp.eq.s32.totalorder %s27, 0
      %p60 = por %p58, %p59
      %p61 = scmp.ne.s32.totalorder %s47, %s48
      %p62 = scmp.eq.s32.totalorder %s28, 1
      %p63 = por %p61, %p62
      %p65 = scmp.ne.s32.totalorder %s48, %s64
      %p66 = scmp.eq.s32.totalorder %s28, 0
      %p67 = por %p65, %p66
      %s68 = ssub.s32 %s29, %s41
      %p69 = scmp.eq.s32.totalorder %s68, 0
      %s71 = sadd.s32 %s70, 1
      %s72 = scalar_select %p69, %s70, %s71
      %p75 = pneg %p69
      %p76 = scmp.eq.s32.totalorder %s22, 1
      %p77 = por %p75, %p76
      %p78 = scmp.ne.s32.totalorder %s70, %s73
      %p79 = scmp.eq.s32.totalorder %s22, 0
      %p80 = por %p78, %p79
      %p81 = scmp.ne.s32.totalorder %s70, %s73
      %p82 = scmp.eq.s32.totalorder %s27, 1
      %p83 = por %p81, %p82
      %p84 = scmp.ne.s32.totalorder %s73, %s74
      %p85 = scmp.eq.s32.totalorder %s27, 0
      %p86 = por %p84, %p85
      %p87 = scmp.ne.s32.totalorder %s73, %s74
      %p88 = scmp.eq.s32.totalorder %s28, 1
      %p89 = por %p87, %p88
      %p91 = scmp.ne.s32.totalorder %s74, %s90
      %p92 = scmp.eq.s32.totalorder %s28, 0
      %p93 = por %p91, %p92
      %s94 = ssub.s32 %s30, %s37
      %p95 = scmp.eq.s32.totalorder %s94, 0
      %s97 = sadd.s32 %s96, 1
      %s98 = scalar_select %p95, %s96, %s97
      %p101 = pneg %p95
      %p102 = scmp.eq.s32.totalorder %s22, 1
      %p103 = por %p101, %p102
      %p104 = scmp.ne.s32.totalorder %s96, %s99
      %p105 = scmp.eq.s32.totalorder %s22, 0
      %p106 = por %p104, %p105
      %p107 = scmp.ne.s32.totalorder %s96, %s99
      %p108 = scmp.eq.s32.totalorder %s27, 1
      %p109 = por %p107, %p108
      %p110 = scmp.ne.s32.totalorder %s99, %s100
      %p111 = scmp.eq.s32.totalorder %s27, 0
      %p112 = por %p110, %p111
      %p113 = scmp.ne.s32.totalorder %s99, %s100
      %p114 = scmp.eq.s32.totalorder %s28, 1
      %p115 = por %p113, %p114
      %p117 = scmp.ne.s32.totalorder %s100, %s116
      %p118 = scmp.eq.s32.totalorder %s28, 0
      %p119 = por %p117, %p118
      %s120 = ssub.s32 %s30, %s37
      %p121 = scmp.eq.s32.totalorder %s120, 0
      %s123 = sadd.s32 %s122, 1
      %s124 = scalar_select %p121, %s122, %s123
      %p127 = pneg %p121
      %p128 = scmp.eq.s32.totalorder %s22, 1
      %p129 = por %p127, %p128
      %p130 = scmp.ne.s32.totalorder %s122, %s125
      %p131 = scmp.eq.s32.totalorder %s22, 0
      %p132 = por %p130, %p131
      %p133 = scmp.ne.s32.totalorder %s122, %s125
      %p134 = scmp.eq.s32.totalorder %s27, 1
      %p135 = por %p133, %p134
      %p136 = scmp.ne.s32.totalorder %s125, %s126
      %p137 = scmp.eq.s32.totalorder %s27, 0
      %p138 = por %p136, %p137
      %p139 = scmp.ne.s32.totalorder %s125, %s126
      %p140 = scmp.eq.s32.totalorder %s28, 1
      %p141 = por %p139, %p140
      %p143 = scmp.ne.s32.totalorder %s126, %s142
      %p144 = scmp.eq.s32.totalorder %s28, 0
      %p145 = por %p143, %p144
      %s146 = ssub.s32 %s30, %s37
      %p147 = scmp.eq.s32.totalorder %s146, 0
      %s149 = sadd.s32 %s148, 1
      %s150 = scalar_select %p147, %s148, %s149
      %p153 = pneg %p147
      %p154 = scmp.eq.s32.totalorder %s22, 1
      %p155 = por %p153, %p154
      %p156 = scmp.ne.s32.totalorder %s148, %s151
      %p157 = scmp.eq.s32.totalorder %s22, 0
      %p158 = por %p156, %p157
      %p159 = scmp.ne.s32.totalorder %s148, %s151
      %p160 = scmp.eq.s32.totalorder %s27, 1
      %p161 = por %p159, %p160
      %p162 = scmp.ne.s32.totalorder %s151, %s152
      %p163 = scmp.eq.s32.totalorder %s27, 0
      %p164 = por %p162, %p163
      %p165 = scmp.ne.s32.totalorder %s151, %s152
      %p166 = scmp.eq.s32.totalorder %s28, 1
      %p167 = por %p165, %p166
      %p169 = scmp.ne.s32.totalorder %s152, %s168
      %p170 = scmp.eq.s32.totalorder %s28, 0
      %p171 = por %p169, %p170
      %s172 = ssub.s32 %s30, %s37
      %p173 = scmp.eq.s32.totalorder %s172, 0
      %s175 = sadd.s32 %s174, 1
      %s176 = scalar_select %p173, %s174, %s175
      %p179 = pneg %p173
      %p180 = scmp.eq.s32.totalorder %s22, 1
      %p181 = por %p179, %p180
      %p182 = scmp.ne.s32.totalorder %s174, %s177
      %p183 = scmp.eq.s32.totalorder %s22, 0
      %p184 = por %p182, %p183
      %p185 = scmp.ne.s32.totalorder %s174, %s177
      %p186 = scmp.eq.s32.totalorder %s27, 1
      %p187 = por %p185, %p186
      %p188 = scmp.ne.s32.totalorder %s177, %s178
      %p189 = scmp.eq.s32.totalorder %s27, 0
      %p190 = por %p188, %p189
      %p191 = scmp.ne.s32.totalorder %s177, %s178
      %p192 = scmp.eq.s32.totalorder %s28, 1
      %p193 = por %p191, %p192
      %p195 = scmp.ne.s32.totalorder %s178, %s194
      %p196 = scmp.eq.s32.totalorder %s28, 0
      %p197 = por %p195, %p196
      %s198 = ssub.s32 %s30, %s37
      %p199 = scmp.eq.s32.totalorder %s198, 0
      %s201 = sadd.s32 %s200, 1
      %s202 = scalar_select %p199, %s200, %s201
      %p205 = pneg %p199
      %p206 = scmp.eq.s32.totalorder %s22, 1
      %p207 = por %p205, %p206
      %p208 = scmp.ne.s32.totalorder %s200, %s203
      %p209 = scmp.eq.s32.totalorder %s22, 0
      %p210 = por %p208, %p209
      %p211 = scmp.ne.s32.totalorder %s200, %s203
      %p212 = scmp.eq.s32.totalorder %s27, 1
      %p213 = por %p211, %p212
      %p214 = scmp.ne.s32.totalorder %s203, %s204
      %p215 = scmp.eq.s32.totalorder %s27, 0
      %p216 = por %p214, %p215
      %p217 = scmp.ne.s32.totalorder %s203, %s204
      %p218 = scmp.eq.s32.totalorder %s28, 1
      %p219 = por %p217, %p218
      %p221 = scmp.ne.s32.totalorder %s204, %s220
      %p222 = scmp.eq.s32.totalorder %s28, 0
      %p223 = por %p221, %p222
      %s225 = sadd.s32 %s224, 1
      %p228 = scmp.eq.s32.totalorder %s22, 1
      %p229 = scmp.ne.s32.totalorder %s224, %s226
      %p230 = scmp.eq.s32.totalorder %s22, 0
      %p231 = por %p229, %p230
      %p232 = scmp.ne.s32.totalorder %s224, %s226
      %p233 = scmp.eq.s32.totalorder %s27, 1
      %p234 = por %p232, %p233
      %p235 = scmp.ne.s32.totalorder %s226, %s227
      %p236 = scmp.eq.s32.totalorder %s27, 0
      %p237 = por %p235, %p236
      %p238 = scmp.ne.s32.totalorder %s226, %s227
      %p239 = scmp.eq.s32.totalorder %s28, 1
      %p240 = por %p238, %p239
      %p242 = scmp.ne.s32.totalorder %s227, %s241
      %p243 = scmp.eq.s32.totalorder %s28, 0
      %p244 = por %p242, %p243
      %s246 = sadd.s32 %s245, 1
      %p249 = scmp.eq.s32.totalorder %s22, 1
      %p250 = scmp.ne.s32.totalorder %s245, %s247
      %p251 = scmp.eq.s32.totalorder %s22, 0
      %p252 = por %p250, %p251
      %p253 = scmp.ne.s32.totalorder %s245, %s247
      %p254 = scmp.eq.s32.totalorder %s27, 1
      %p255 = por %p253, %p254
      %p256 = scmp.ne.s32.totalorder %s247, %s248
      %p257 = scmp.eq.s32.totalorder %s27, 0
      %p258 = por %p256, %p257
      %p259 = scmp.ne.s32.totalorder %s247, %s248
      %p260 = scmp.eq.s32.totalorder %s28, 1
      %p261 = por %p259, %p260
      %p263 = scmp.ne.s32.totalorder %s248, %s262
      %p264 = scmp.eq.s32.totalorder %s28, 0
      %p265 = por %p263, %p264
      %s266 = ssub.s32 %s29, %s41
      %p267 = scmp.eq.s32.totalorder %s266, 0
      %s269 = sadd.s32 %s268, 1
      %s270 = scalar_select %p267, %s268, %s269
      %p273 = pneg %p267
      %p274 = scmp.eq.s32.totalorder %s22, 1
      %p275 = por %p273, %p274
      %p276 = scmp.ne.s32.totalorder %s268, %s271
      %p277 = scmp.eq.s32.totalorder %s22, 0
      %p278 = por %p276, %p277
      %p279 = scmp.ne.s32.totalorder %s268, %s271
      %p280 = scmp.eq.s32.totalorder %s27, 1
      %p281 = por %p279, %p280
      %p282 = scmp.ne.s32.totalorder %s271, %s272
      %p283 = scmp.eq.s32.totalorder %s27, 0
      %p284 = por %p282, %p283
      %p285 = scmp.ne.s32.totalorder %s271, %s272
      %p286 = scmp.eq.s32.totalorder %s28, 1
      %p287 = por %p285, %p286
      %p289 = scmp.ne.s32.totalorder %s272, %s288
      %p290 = scmp.eq.s32.totalorder %s28, 0
      %p291 = por %p289, %p290
      %s292 = ssub.s32 %s29, %s41
      %p293 = scmp.eq.s32.totalorder %s292, 0
      %s295 = sadd.s32 %s294, 1
      %s296 = scalar_select %p293, %s294, %s295
      %p299 = pneg %p293
      %p300 = scmp.eq.s32.totalorder %s22, 1
      %p301 = por %p299, %p300
      %p302 = scmp.ne.s32.totalorder %s294, %s297
      %p303 = scmp.eq.s32.totalorder %s22, 0
      %p304 = por %p302, %p303
      %p305 = scmp.ne.s32.totalorder %s294, %s297
      %p306 = scmp.eq.s32.totalorder %s27, 1
      %p307 = por %p305, %p306
      %p308 = scmp.ne.s32.totalorder %s297, %s298
      %p309 = scmp.eq.s32.totalorder %s27, 0
      %p310 = por %p308, %p309
      %p311 = scmp.ne.s32.totalorder %s297, %s298
      %p312 = scmp.eq.s32.totalorder %s28, 1
      %p313 = por %p311, %p312
      %p315 = scmp.ne.s32.totalorder %s298, %s314
      %p316 = scmp.eq.s32.totalorder %s28, 0
      %p317 = por %p315, %p316
      %p318 = scmp.le.s32.totalorder 1, %s22
      %p319 = scmp.lt.s32.totalorder %s22, 3
      %p320 = pnand %p318, %p319
      %p321 = pneg %p320
      // Predicated region
      $region9: #{tpu_custom_call.1} parent=5 // pred_check
        _
      $region10: #{tpu_custom_call.1} parent=5 // pred_check_branch
        %323 = sbr.rel (%p320) target = $region12
      $region11: #{tpu_custom_call.1} parent=5 // pred_region
        %s324 = ssub.s32 %s22, 1
        // Predicated region
        $region13: #{tpu_custom_call.1} parent=11 // pred_check
          %p325 = pneg %p60
        $region14: #{tpu_custom_call.1} parent=11 // pred_check_branch
          %327 = sbr.rel (%p325) target = $region16
        $region15: #{tpu_custom_call.1} parent=11 // pred_region
          %s328 = smul.u32 2, %s31
          %s330 = ssub.s32 128, 128
          %331 = vsyncadd [#allocation3], %s330
          %s332 = smul.addr %s328, 64
          %s333 = scalar_lea.hbm %s0, %s332
          %s334 = sshll.u32 [#allocation2], 4
          %s335 = int_to_ptr.vmem [resolvable:$true] %s334
          %340 = dma.hbm_to_vmem [thread:$0]  %s333, 128, %s335, [#allocation3], 64, 64, 4
        $region16: #{tpu_custom_call.1} parent=11 // pred_fallthru
          _
        // Predicated region
        $region17: #{tpu_custom_call.1} parent=11 // pred_check
          %p341 = pneg %p86
        $region18: #{tpu_custom_call.1} parent=11 // pred_check_branch
          %343 = sbr.rel (%p341) target = $region20
        $region19: #{tpu_custom_call.1} parent=11 // pred_region
          %s344 = smul.u32 2, %s31
          %s346 = ssub.s32 32, 32
          %347 = vsyncadd [#allocation6], %s346
          %s348 = smul.addr %s344, 16
          %s349 = scalar_lea.hbm %s1, %s348
          %s350 = sshll.u32 [#allocation5], 4
          %s351 = int_to_ptr.vmem [resolvable:$true] %s350
          %356 = dma.hbm_to_vmem [thread:$0]  %s349, 32, %s351, [#allocation6], 16, 16, 1
        $region20: #{tpu_custom_call.1} parent=11 // pred_fallthru
          _
        // Predicated region
        $region21: #{tpu_custom_call.1} parent=11 // pred_check
          %p357 = pneg %p237
        $region22: #{tpu_custom_call.1} parent=11 // pred_check_branch
          %359 = sbr.rel (%p357) target = $region24
        $region23: #{tpu_custom_call.1} parent=11 // pred_region
          %s361 = ssub.s32 256, 256
          %362 = vsyncadd [#allocation6], %s361
          %s363 = sshll.u32 [#allocation12], 4
          %s364 = int_to_ptr.vmem [resolvable:$true] %s363
          %369 = dma.hbm_to_vmem [thread:$0]  %s7, 256, %s364, [#allocation6], 64, 64, 4
        $region24: #{tpu_custom_call.1} parent=11 // pred_fallthru
          _
        // Predicated region
        $region25: #{tpu_custom_call.1} parent=11 // pred_check
          %p370 = pneg %p258
        $region26: #{tpu_custom_call.1} parent=11 // pred_check_branch
          %372 = sbr.rel (%p370) target = $region28
        $region27: #{tpu_custom_call.1} parent=11 // pred_region
          %s374 = ssub.s32 16, 16
          %375 = vsyncadd [#allocation14], %s374
          %s377 = sshll.u32 [#allocation13], 4
          %s378 = int_to_ptr.vmem [resolvable:$true] %s377
          %380 = dma.hbm_to_vmem [thread:$0]  %s8, 16, %s378, [#allocation14]
        $region28: #{tpu_custom_call.1} parent=11 // pred_fallthru
          _
      $region12: #{tpu_custom_call.1} parent=5 // pred_fallthru
        _
      %p381 = scmp.lt.s32.totalorder %s22, 2
      // Predicated region
      $region29: #{tpu_custom_call.1} parent=5 // pred_check
        %p382 = pneg %p381
      $region30: #{tpu_custom_call.1} parent=5 // pred_check_branch
        %384 = sbr.rel (%p382) target = $region32
      $region31: #{tpu_custom_call.1} parent=5 // pred_region
        // Predicated region
        $region33: #{tpu_custom_call.1} parent=31 // pred_check
          %p385 = pneg %p106
        $region34: #{tpu_custom_call.1} parent=31 // pred_check_branch
          %387 = sbr.rel (%p385) target = $region36
        $region35: #{tpu_custom_call.1} parent=31 // pred_region
          %s388 = sand.u32 %s22, 1
          %s389 = scalar_lea.sflag [#allocation3], %s388
          %s390 = sand.u32 %s96, 1
          %s391 = smul.addr %s390, 16
          %s392 = scalar_lea.vmem [#allocation7], %s391
          %s394 = ssub.s32 256, 256
          %395 = vsyncadd %s389, %s394
          %s396 = smul.addr %s30, 4
          %s397 = smul.addr %s396, 64
          %s398 = scalar_lea.hbm %s2, %s397
          %s399 = sshll.u32 %s392, 4
          %s400 = int_to_ptr.vmem [resolvable:$true] %s399
          %405 = dma.hbm_to_vmem [thread:$0]  %s398, 256, %s400, %s389, 64, 64, 4
        $region36: #{tpu_custom_call.1} parent=31 // pred_fallthru
          _
        // Predicated region
        $region37: #{tpu_custom_call.1} parent=31 // pred_check
          %p406 = pneg %p132
        $region38: #{tpu_custom_call.1} parent=31 // pred_check_branch
          %408 = sbr.rel (%p406) target = $region40
        $region39: #{tpu_custom_call.1} parent=31 // pred_region
          %s409 = sand.u32 %s22, 1
          %s410 = scalar_lea.sflag [#allocation3], %s409
          %s411 = sand.u32 %s122, 1
          %s412 = smul.addr %s411, 16
          %s413 = scalar_lea.vmem [#allocation8], %s412
          %s415 = ssub.s32 256, 256
          %416 = vsyncadd %s410, %s415
          %s417 = smul.addr %s30, 4
          %s418 = smul.addr %s417, 64
          %s419 = scalar_lea.hbm %s3, %s418
          %s420 = sshll.u32 %s413, 4
          %s421 = int_to_ptr.vmem [resolvable:$true] %s420
          %426 = dma.hbm_to_vmem [thread:$0]  %s419, 256, %s421, %s410, 64, 64, 4
        $region40: #{tpu_custom_call.1} parent=31 // pred_fallthru
          _
        // Predicated region
        $region41: #{tpu_custom_call.1} parent=31 // pred_check
          %p427 = pneg %p158
        $region42: #{tpu_custom_call.1} parent=31 // pred_check_branch
          %429 = sbr.rel (%p427) target = $region44
        $region43: #{tpu_custom_call.1} parent=31 // pred_region
          %s430 = sand.u32 %s22, 1
          %s431 = scalar_lea.sflag [#allocation3], %s430
          %s432 = sand.u32 %s148, 1
          %s433 = smul.addr %s432, 16
          %s434 = scalar_lea.vmem [#allocation9], %s433
          %s436 = ssub.s32 256, 256
          %437 = vsyncadd %s431, %s436
          %s438 = smul.addr %s30, 4
          %s439 = smul.addr %s438, 64
          %s440 = scalar_lea.hbm %s4, %s439
          %s441 = sshll.u32 %s434, 4
          %s442 = int_to_ptr.vmem [resolvable:$true] %s441
          %447 = dma.hbm_to_vmem [thread:$0]  %s440, 256, %s442, %s431, 64, 64, 4
        $region44: #{tpu_custom_call.1} parent=31 // pred_fallthru
          _
        // Predicated region
        $region45: #{tpu_custom_call.1} parent=31 // pred_check
          %p448 = pneg %p184
        $region46: #{tpu_custom_call.1} parent=31 // pred_check_branch
          %450 = sbr.rel (%p448) target = $region48
        $region47: #{tpu_custom_call.1} parent=31 // pred_region
          %s451 = sand.u32 %s22, 1
          %s452 = scalar_lea.sflag [#allocation3], %s451
          %s453 = sand.u32 %s174, 1
          %s454 = smul.addr %s453, 32
          %s455 = scalar_lea.vmem [#allocation10], %s454
          %s457 = ssub.s32 512, 512
          %458 = vsyncadd %s452, %s457
          %s459 = smul.addr %s30, 8
          %s460 = smul.addr %s459, 64
          %s461 = scalar_lea.hbm %s5, %s460
          %s462 = sshll.u32 %s455, 4
          %s463 = int_to_ptr.vmem [resolvable:$true] %s462
          %468 = dma.hbm_to_vmem [thread:$0]  %s461, 512, %s463, %s452, 64, 64, 4
        $region48: #{tpu_custom_call.1} parent=31 // pred_fallthru
          _
        // Predicated region
        $region49: #{tpu_custom_call.1} parent=31 // pred_check
          %p469 = pneg %p210
        $region50: #{tpu_custom_call.1} parent=31 // pred_check_branch
          %471 = sbr.rel (%p469) target = $region52
        $region51: #{tpu_custom_call.1} parent=31 // pred_region
          %s472 = sand.u32 %s22, 1
          %s473 = scalar_lea.sflag [#allocation3], %s472
          %s474 = sand.u32 %s200, 1
          %s475 = smul.addr %s474, 8
          %s476 = scalar_lea.vmem [#allocation11], %s475
          %s478 = ssub.s32 128, 128
          %479 = vsyncadd %s473, %s478
          %s480 = smul.addr %s30, 128
          %s481 = scalar_lea.hbm %s6, %s480
          %s483 = sshll.u32 %s476, 4
          %s484 = int_to_ptr.vmem [resolvable:$true] %s483
          %486 = dma.hbm_to_vmem [thread:$0]  %s481, 128, %s484, %s473
        $region52: #{tpu_custom_call.1} parent=31 // pred_fallthru
          _
      $region32: #{tpu_custom_call.1} parent=5 // pred_fallthru
        _
      %p487 = scmp.le.s32.totalorder 1, %s22
      %p488 = scmp.lt.s32.totalorder %s22, 3
      %p489 = pnand %p487, %p488
      %p490 = pneg %p489
      // Predicated region
      $region53: #{tpu_custom_call.1} parent=5 // pred_check
        _
      $region54: #{tpu_custom_call.1} parent=5 // pred_check_branch
        %492 = sbr.rel (%p489) target = $region56
      $region55: #{tpu_custom_call.1} parent=5 // pred_region
        %s493 = ssub.s32 %s22, 1
        // Predicated region
        $region57: #{tpu_custom_call.1} parent=55 // pred_check
          %p494 = pneg %p60
        $region58: #{tpu_custom_call.1} parent=55 // pred_check_branch
          %496 = sbr.rel (%p494) target = $region60
        $region59: #{tpu_custom_call.1} parent=55 // pred_region
          %497 = dma.done [#allocation3], 128
        $region60: #{tpu_custom_call.1} parent=55 // pred_fallthru
          _
        // Predicated region
        $region61: #{tpu_custom_call.1} parent=55 // pred_check
          %p498 = pneg %p86
        $region62: #{tpu_custom_call.1} parent=55 // pred_check_branch
          %500 = sbr.rel (%p498) target = $region64
        $region63: #{tpu_custom_call.1} parent=55 // pred_region
          %501 = dma.done [#allocation6], 32
        $region64: #{tpu_custom_call.1} parent=55 // pred_fallthru
          _
        %s502 = sand.u32 %s27, 1
        %s503 = scalar_lea.sflag [#allocation3], %s502
        %s504 = sand.u32 %s99, 1
        %s505 = smul.addr %s504, 16
        %s506 = scalar_lea.vmem [#allocation7], %s505
        // Predicated region
        $region65: #{tpu_custom_call.1} parent=55 // pred_check
          %p507 = pneg %p112
        $region66: #{tpu_custom_call.1} parent=55 // pred_check_branch
          %509 = sbr.rel (%p507) target = $region68
        $region67: #{tpu_custom_call.1} parent=55 // pred_region
          %510 = dma.done %s503, 256
        $region68: #{tpu_custom_call.1} parent=55 // pred_fallthru
          _
        %s511 = sand.u32 %s27, 1
        %s512 = scalar_lea.sflag [#allocation3], %s511
        %s513 = sand.u32 %s125, 1
        %s514 = smul.addr %s513, 16
        %s515 = scalar_lea.vmem [#allocation8], %s514
        // Predicated region
        $region69: #{tpu_custom_call.1} parent=55 // pred_check
          %p516 = pneg %p138
        $region70: #{tpu_custom_call.1} parent=55 // pred_check_branch
          %518 = sbr.rel (%p516) target = $region72
        $region71: #{tpu_custom_call.1} parent=55 // pred_region
          %519 = dma.done %s512, 256
        $region72: #{tpu_custom_call.1} parent=55 // pred_fallthru
          _
        %s520 = sand.u32 %s27, 1
        %s521 = scalar_lea.sflag [#allocation3], %s520
        %s522 = sand.u32 %s151, 1
        %s523 = smul.addr %s522, 16
        %s524 = scalar_lea.vmem [#allocation9], %s523
        // Predicated region
        $region73: #{tpu_custom_call.1} parent=55 // pred_check
          %p525 = pneg %p164
        $region74: #{tpu_custom_call.1} parent=55 // pred_check_branch
          %527 = sbr.rel (%p525) target = $region76
        $region75: #{tpu_custom_call.1} parent=55 // pred_region
          %528 = dma.done %s521, 256
        $region76: #{tpu_custom_call.1} parent=55 // pred_fallthru
          _
        %s529 = sand.u32 %s27, 1
        %s530 = scalar_lea.sflag [#allocation3], %s529
        %s531 = sand.u32 %s177, 1
        %s532 = smul.addr %s531, 32
        %s533 = scalar_lea.vmem [#allocation10], %s532
        // Predicated region
        $region77: #{tpu_custom_call.1} parent=55 // pred_check
          %p534 = pneg %p190
        $region78: #{tpu_custom_call.1} parent=55 // pred_check_branch
          %536 = sbr.rel (%p534) target = $region80
        $region79: #{tpu_custom_call.1} parent=55 // pred_region
          %537 = dma.done %s530, 512
        $region80: #{tpu_custom_call.1} parent=55 // pred_fallthru
          _
        %s538 = sand.u32 %s27, 1
        %s539 = scalar_lea.sflag [#allocation3], %s538
        %s540 = sand.u32 %s203, 1
        %s541 = smul.addr %s540, 8
        %s542 = scalar_lea.vmem [#allocation11], %s541
        // Predicated region
        $region81: #{tpu_custom_call.1} parent=55 // pred_check
          %p543 = pneg %p216
        $region82: #{tpu_custom_call.1} parent=55 // pred_check_branch
          %545 = sbr.rel (%p543) target = $region84
        $region83: #{tpu_custom_call.1} parent=55 // pred_region
          %546 = dma.done %s539, 128
        $region84: #{tpu_custom_call.1} parent=55 // pred_fallthru
          _
        // Predicated region
        $region85: #{tpu_custom_call.1} parent=55 // pred_check
          %p547 = pneg %p237
        $region86: #{tpu_custom_call.1} parent=55 // pred_check_branch
          %549 = sbr.rel (%p547) target = $region88
        $region87: #{tpu_custom_call.1} parent=55 // pred_region
          %550 = dma.done [#allocation6], 256
        $region88: #{tpu_custom_call.1} parent=55 // pred_fallthru
          _
        // Predicated region
        $region89: #{tpu_custom_call.1} parent=55 // pred_check
          %p551 = pneg %p258
        $region90: #{tpu_custom_call.1} parent=55 // pred_check_branch
          %553 = sbr.rel (%p551) target = $region92
        $region91: #{tpu_custom_call.1} parent=55 // pred_region
          %554 = dma.done [#allocation14], 16
        $region92: #{tpu_custom_call.1} parent=55 // pred_fallthru
          _
        %p555 = pneg %p60
        %p556 = pneg %p57
        %p557 = pneg %p86
        %p558 = pneg %p83
        %s559 = sand.u32 %s27, 1
        %s560 = scalar_lea.sflag [#allocation3], %s559
        %s561 = sand.u32 %s99, 1
        %s562 = smul.addr %s561, 16
        %s563 = scalar_lea.vmem [#allocation7], %s562
        %p564 = pneg %p112
        %p565 = pneg %p109
        %s566 = sand.u32 %s27, 1
        %s567 = scalar_lea.sflag [#allocation3], %s566
        %s568 = sand.u32 %s125, 1
        %s569 = smul.addr %s568, 16
        %s570 = scalar_lea.vmem [#allocation8], %s569
        %p571 = pneg %p138
        %p572 = pneg %p135
        %s573 = sand.u32 %s27, 1
        %s574 = scalar_lea.sflag [#allocation3], %s573
        %s575 = sand.u32 %s151, 1
        %s576 = smul.addr %s575, 16
        %s577 = scalar_lea.vmem [#allocation9], %s576
        %p578 = pneg %p164
        %p579 = pneg %p161
        %s580 = sand.u32 %s27, 1
        %s581 = scalar_lea.sflag [#allocation3], %s580
        %s582 = sand.u32 %s177, 1
        %s583 = smul.addr %s582, 32
        %s584 = scalar_lea.vmem [#allocation10], %s583
        %p585 = pneg %p190
        %p586 = pneg %p187
        %s587 = sand.u32 %s27, 1
        %s588 = scalar_lea.sflag [#allocation3], %s587
        %s589 = sand.u32 %s203, 1
        %s590 = smul.addr %s589, 8
        %s591 = scalar_lea.vmem [#allocation11], %s590
        %p592 = pneg %p216
        %p593 = pneg %p213
        %p594 = pneg %p237
        %p595 = pneg %p234
        %p596 = pneg %p258
        %p597 = pneg %p255
        %p598 = pneg %p284
        %p599 = pneg %p281
        %p600 = pneg %p310
        %p601 = pneg %p307
        %s602 = smul.u32 2, %s31
        %s603 = smul.u32 2, %s31
        %s604 = smul.u32 2, %s31
        %p606 = scmp.eq.s32.totalorder %s32, 0
        // Predicated region
        $region93: #{tpu_custom_call.1} parent=55 // pred_check
          %p607 = pneg %p606
        $region94: #{tpu_custom_call.1} parent=55 // pred_check_branch
          %609 = sbr.rel (%p607) target = $region96
        $region95: #{tpu_custom_call.1} parent=55 // pred_region
          %v610 = vld [vmem:[#allocation2] sm:$0xf]
          %v611 = vld [vmem:[#allocation2 + $0x4] sm:$0xf]
          %vm612 = vcmask 257024
          %613 = vst.msk [vmem:[#allocation15] sm:$0xf] %vm612, %v610
          %614 = vst.msk [vmem:[#allocation15 + $0x4] sm:$0xf] %vm612, %v611
        $region96: #{tpu_custom_call.1} parent=55 // pred_fallthru
          _
        %v615 = vld [vmem:[%s542] sm:$0xff]
        %v616 = vld [vmem:[#allocation15] sm:$0xf]
        %v617 = vld [vmem:[#allocation15 + $0x4] sm:$0xf]
        %v618 = vunpack.c.l.bf16 %v616
        %v619 = vunpack.c.l.bf16 %v617
        %v620 = vld [vmem:[%s506] sm:$0xf]
        %v621 = vld [vmem:[%s506 + $0x4] sm:$0xf]
        %v622 = vld [vmem:[%s506 + $0x8] sm:$0xf]
        %v623 = vld [vmem:[%s506 + $0xc] sm:$0xf]
        %v624 = vlaneseq
        %v625 = vshrl.u32 %v624, 7
        %v626 = vsub.s32 0, %v625
        %v627 = vrot.slane %v615, %v626
        %v630 = vunpack.c.l.b16 %v616
        %v631 = vunpack.c.l.b16 %v617
        %v632 = vpack.c.b16 %v631, %v630
        %v637 = vunpack.c.l.b16 %v620
        %v638 = vunpack.c.l.b16 %v621
        %v639 = vunpack.c.l.b16 %v622
        %v640 = vunpack.c.l.b16 %v623
        %v641 = vpack.c.b16 %v638, %v637
        %v642 = vpack.c.b16 %v640, %v639
        %vm645 = vcmask 261120
        %v647 = vsel %vm645, %v632, 0
        %649 = vmatprep.subr.bf16.mxu0 0
        %650 = vmatpush1.bf16.msra.mxu0 %v641
        %651 = vmatprep.subr.bf16.mxu0 0
        %652 = vmatpush1.bf16.msra.mxu0 %v642
        %653 = vmatprep.subr.bf16.mxu0 0
        %654 = vmatpush1.bf16.msra.mxu0 0
        %655 = vmatprep.subr.bf16.mxu0 0
        %656 = vmatpush1.bf16.msra.mxu0 0
        %657 = vmatprep.subr.bf16.mxu0 0
        %658 = vmatpush1.bf16.msra.mxu0 0
        %659 = vmatprep.subr.bf16.mxu0 0
        %660 = vmatpush1.bf16.msra.mxu0 0
        %661 = vmatprep.subr.bf16.mxu0 0
        %662 = vmatpush1.bf16.msra.mxu0 0
        %663 = vmatprep.subr.bf16.mxu0 0
        %664 = vmatpush1.bf16.msra.mxu0 0
        %665 = vmatprep.subr.bf16.mxu0 0
        %666 = vmatpush1.bf16.msra.mxu0 0
        %667 = vmatprep.subr.bf16.mxu0 0
        %668 = vmatpush1.bf16.msra.mxu0 0
        %669 = vmatprep.subr.bf16.mxu0 0
        %670 = vmatpush1.bf16.msra.mxu0 0
        %671 = vmatprep.subr.bf16.mxu0 0
        %672 = vmatpush1.bf16.msra.mxu0 0
        %673 = vmatprep.subr.bf16.mxu0 0
        %674 = vmatpush1.bf16.msra.mxu0 0
        %675 = vmatprep.subr.bf16.mxu0 0
        %676 = vmatpush1.bf16.msra.mxu0 0
        %677 = vmatprep.subr.bf16.mxu0 0
        %678 = vmatpush1.bf16.msra.mxu0 0
        %679 = vmatprep.subr.bf16.mxu0 0
        %680 = vmatpush1.bf16.msra.mxu0 0
        %681 = vmatprep.mubr.bf16.mxu0 0
        %682 = vmatmul.mubr.bf16.gmra.mrb[0].mxu0 %v647
        %v683 = vpop.f32.mrb[0].mxu0
        %v684 = vadd.f32 %v627, %v683
        %v685 = vpop.f32.mrb[0].mxu0
        %v686 = vpop.f32.mrb[0].mxu0
        %v687 = vadd.f32 %v627, %v686
        %v688 = vpop.f32.mrb[0].mxu0
        %689 = vdwg.mxu0
        %v690 = vpack.c.bf16 %v687, %v684
        %v692 = vunpack.c.l.b16 %v690
        %v693 = vunpack.c.h.b16 %v690
        %v694 = vpack.c.b16 %v692, %v692
        %v695 = vpack.c.b16 %v693, %v693
        %696 = vrot.lane.b32.xlu0 %v694, 104
        %v697 = vpop.permute.xlu0 %696
        %698 = vrot.lane.b32.xlu0 %v695, 104
        %v699 = vpop.permute.xlu0 %698
        %700 = vrot.lane.b32.xlu0 %v694, 80
        %v701 = vpop.permute.xlu0 %700
        %702 = vrot.lane.b32.xlu0 %v695, 80
        %v703 = vpop.permute.xlu0 %702
        %704 = vrot.lane.b32.xlu0 %v694, 56
        %v705 = vpop.permute.xlu0 %704
        %706 = vrot.lane.b32.xlu0 %v695, 56
        %v707 = vpop.permute.xlu0 %706
        %708 = vrot.lane.b32.xlu0 %v694, 120
        %v709 = vpop.permute.xlu0 %708
        %vm710 = vcmask 64512
        %v712 = vsel %vm710, %v694, 0
        %v715 = vsel %vm710, %v709, 0
        %717 = vmatprep.subr.bf16.mxu0 0
        %718 = vmatpush1.bf16.xpose.msra.mxu0 %v715
        %719 = vmatprep.subr.bf16.mxu0 0
        %720 = vmatpush1.bf16.xpose.msra.mxu0 0
        %721 = vmatprep.subr.bf16.mxu0 0
        %722 = vmatpush1.bf16.xpose.msra.mxu0 0
        %723 = vmatprep.subr.bf16.mxu0 0
        %724 = vmatpush1.bf16.xpose.msra.mxu0 0
        %725 = vmatprep.subr.bf16.mxu0 0
        %726 = vmatpush1.bf16.xpose.msra.mxu0 0
        %727 = vmatprep.subr.bf16.mxu0 0
        %728 = vmatpush1.bf16.xpose.msra.mxu0 0
        %729 = vmatprep.subr.bf16.mxu0 0
        %730 = vmatpush1.bf16.xpose.msra.mxu0 0
        %731 = vmatprep.subr.bf16.mxu0 0
        %732 = vmatpush1.bf16.xpose.msra.mxu0 0
        %733 = vmatprep.subr.bf16.mxu0 0
        %734 = vmatpush1.bf16.xpose.msra.mxu0 0
        %735 = vmatprep.subr.bf16.mxu0 0
        %736 = vmatpush1.bf16.xpose.msra.mxu0 0
        %737 = vmatprep.subr.bf16.mxu0 0
        %738 = vmatpush1.bf16.xpose.msra.mxu0 0
        %739 = vmatprep.subr.bf16.mxu0 0
        %740 = vmatpush1.bf16.xpose.msra.mxu0 0
        %741 = vmatprep.subr.bf16.mxu0 0
        %742 = vmatpush1.bf16.xpose.msra.mxu0 0
        %743 = vmatprep.subr.bf16.mxu0 0
        %744 = vmatpush1.bf16.xpose.msra.mxu0 0
        %745 = vmatprep.subr.bf16.mxu0 0
        %746 = vmatpush1.bf16.xpose.msra.mxu0 0
        %747 = vmatprep.subr.bf16.mxu0 0
        %748 = vmatpush1.bf16.xpose.msra.mxu0 0
        %749 = vmatprep.mubr.bf16.mxu0 0
        %750 = vmatmul.mubr.bf16.gmra.mrb[0].mxu0 %v712
        %v751 = vpop.f32.mrb[0].mxu0
        %v752 = vadd.f32 0.0, %v751
        %v753 = vpop.f32.mrb[0].mxu0
        %v754 = vpop.f32.mrb[0].mxu0
        %v755 = vpop.f32.mrb[0].mxu0
        %756 = vdwg.mxu0
        %757 = vrot.lane.b32.xlu0 %v695, 120
        %v758 = vpop.permute.xlu0 %757
        %v760 = vsel %vm710, %v695, 0
        %v763 = vsel %vm710, %v758, 0
        %765 = vmatprep.subr.bf16.mxu0 0
        %766 = vmatpush1.bf16.xpose.msra.mxu0 %v763
        %767 = vmatprep.subr.bf16.mxu0 0
        %768 = vmatpush1.bf16.xpose.msra.mxu0 0
        %769 = vmatprep.subr.bf16.mxu0 0
        %770 = vmatpush1.bf16.xpose.msra.mxu0 0
        %771 = vmatprep.subr.bf16.mxu0 0
        %772 = vmatpush1.bf16.xpose.msra.mxu0 0
        %773 = vmatprep.subr.bf16.mxu0 0
        %774 = vmatpush1.bf16.xpose.msra.mxu0 0
        %775 = vmatprep.subr.bf16.mxu0 0
        %776 = vmatpush1.bf16.xpose.msra.mxu0 0
        %777 = vmatprep.subr.bf16.mxu0 0
        %778 = vmatpush1.bf16.xpose.msra.mxu0 0
        %779 = vmatprep.subr.bf16.mxu0 0
        %780 = vmatpush1.bf16.xpose.msra.mxu0 0
        %781 = vmatprep.subr.bf16.mxu0 0
        %782 = vmatpush1.bf16.xpose.msra.mxu0 0
        %783 = vmatprep.subr.bf16.mxu0 0
        %784 = vmatpush1.bf16.xpose.msra.mxu0 0
        %785 = vmatprep.subr.bf16.mxu0 0
        %786 = vmatpush1.bf16.xpose.msra.mxu0 0
        %787 = vmatprep.subr.bf16.mxu0 0
        %788 = vmatpush1.bf16.xpose.msra.mxu0 0
        %789 = vmatprep.subr.bf16.mxu0 0
        %790 = vmatpush1.bf16.xpose.msra.mxu0 0
        %791 = vmatprep.subr.bf16.mxu0 0
        %792 = vmatpush1.bf16.xpose.msra.mxu0 0
        %793 = vmatprep.subr.bf16.mxu0 0
        %794 = vmatpush1.bf16.xpose.msra.mxu0 0
        %795 = vmatprep.subr.bf16.mxu0 0
        %796 = vmatpush1.bf16.xpose.msra.mxu0 0
        %797 = vmatprep.mubr.bf16.mxu0 0
        %798 = vmatmul.mubr.bf16.gmra.mrb[0].mxu0 %v760
        %v799 = vpop.f32.mrb[0].mxu0
        %v800 = vadd.f32 0.0, %v799
        %v801 = vpop.f32.mrb[0].mxu0
        %v802 = vpop.f32.mrb[0].mxu0
        %v803 = vpop.f32.mrb[0].mxu0
        %804 = vdwg.mxu0
        %v805 = vunpack.c.l.b16 %v697
        %v806 = vpack.c.b16 %v805, %v805
        %807 = vrot.lane.b32.xlu0 %v806, 120
        %v808 = vpop.permute.xlu0 %807
        %v810 = vsel %vm710, %v697, 0
        %v813 = vsel %vm710, %v808, 0
        %815 = vmatprep.subr.bf16.mxu0 0
        %816 = vmatpush1.bf16.xpose.msra.mxu0 %v813
        %817 = vmatprep.subr.bf16.mxu0 0
        %818 = vmatpush1.bf16.xpose.msra.mxu0 0
        %819 = vmatprep.subr.bf16.mxu0 0
        %820 = vmatpush1.bf16.xpose.msra.mxu0 0
        %821 = vmatprep.subr.bf16.mxu0 0
        %822 = vmatpush1.bf16.xpose.msra.mxu0 0
        %823 = vmatprep.subr.bf16.mxu0 0
        %824 = vmatpush1.bf16.xpose.msra.mxu0 0
        %825 = vmatprep.subr.bf16.mxu0 0
        %826 = vmatpush1.bf16.xpose.msra.mxu0 0
        %827 = vmatprep.subr.bf16.mxu0 0
        %828 = vmatpush1.bf16.xpose.msra.mxu0 0
        %829 = vmatprep.subr.bf16.mxu0 0
        %830 = vmatpush1.bf16.xpose.msra.mxu0 0
        %831 = vmatprep.subr.bf16.mxu0 0
        %832 = vmatpush1.bf16.xpose.msra.mxu0 0
        %833 = vmatprep.subr.bf16.mxu0 0
        %834 = vmatpush1.bf16.xpose.msra.mxu0 0
        %835 = vmatprep.subr.bf16.mxu0 0
        %836 = vmatpush1.bf16.xpose.msra.mxu0 0
        %837 = vmatprep.subr.bf16.mxu0 0
        %838 = vmatpush1.bf16.xpose.msra.mxu0 0
        %839 = vmatprep.subr.bf16.mxu0 0
        %840 = vmatpush1.bf16.xpose.msra.mxu0 0
        %841 = vmatprep.subr.bf16.mxu0 0
        %842 = vmatpush1.bf16.xpose.msra.mxu0 0
        %843 = vmatprep.subr.bf16.mxu0 0
        %844 = vmatpush1.bf16.xpose.msra.mxu0 0
        %845 = vmatprep.subr.bf16.mxu0 0
        %846 = vmatpush1.bf16.xpose.msra.mxu0 0
        %847 = vmatprep.mubr.bf16.mxu0 0
        %848 = vmatmul.mubr.bf16.gmra.mrb[0].mxu0 %v810
        %v849 = vpop.f32.mrb[0].mxu0
        %v850 = vadd.f32 0.0, %v849
        %v851 = vpop.f32.mrb[0].mxu0
        %v852 = vpop.f32.mrb[0].mxu0
        %v853 = vpop.f32.mrb[0].mxu0
        %854 = vdwg.mxu0
        %v855 = vunpack.c.l.b16 %v699
        %v856 = vpack.c.b16 %v855, %v855
        %857 = vrot.lane.b32.xlu0 %v856, 120
        %v858 = vpop.permute.xlu0 %857
        %v860 = vsel %vm710, %v699, 0
        %v863 = vsel %vm710, %v858, 0
        %865 = vmatprep.subr.bf16.mxu0 0
        %866 = vmatpush1.bf16.xpose.msra.mxu0 %v863
        %867 = vmatprep.subr.bf16.mxu0 0
        %868 = vmatpush1.bf16.xpose.msra.mxu0 0
        %869 = vmatprep.subr.bf16.mxu0 0
        %870 = vmatpush1.bf16.xpose.msra.mxu0 0
        %871 = vmatprep.subr.bf16.mxu0 0
        %872 = vmatpush1.bf16.xpose.msra.mxu0 0
        %873 = vmatprep.subr.bf16.mxu0 0
        %874 = vmatpush1.bf16.xpose.msra.mxu0 0
        %875 = vmatprep.subr.bf16.mxu0 0
        %876 = vmatpush1.bf16.xpose.msra.mxu0 0
        %877 = vmatprep.subr.bf16.mxu0 0
        %878 = vmatpush1.bf16.xpose.msra.mxu0 0
        %879 = vmatprep.subr.bf16.mxu0 0
        %880 = vmatpush1.bf16.xpose.msra.mxu0 0
        %881 = vmatprep.subr.bf16.mxu0 0
        %882 = vmatpush1.bf16.xpose.msra.mxu0 0
        %883 = vmatprep.subr.bf16.mxu0 0
        %884 = vmatpush1.bf16.xpose.msra.mxu0 0
        %885 = vmatprep.subr.bf16.mxu0 0
        %886 = vmatpush1.bf16.xpose.msra.mxu0 0
        %887 = vmatprep.subr.bf16.mxu0 0
        %888 = vmatpush1.bf16.xpose.msra.mxu0 0
        %889 = vmatprep.subr.bf16.mxu0 0
        %890 = vmatpush1.bf16.xpose.msra.mxu0 0
        %891 = vmatprep.subr.bf16.mxu0 0
        %892 = vmatpush1.bf16.xpose.msra.mxu0 0
        %893 = vmatprep.subr.bf16.mxu0 0
        %894 = vmatpush1.bf16.xpose.msra.mxu0 0
        %895 = vmatprep.subr.bf16.mxu0 0
        %896 = vmatpush1.bf16.xpose.msra.mxu0 0
        %897 = vmatprep.mubr.bf16.mxu0 0
        %898 = vmatmul.mubr.bf16.gmra.mrb[0].mxu0 %v860
        %v899 = vpop.f32.mrb[0].mxu0
        %v900 = vadd.f32 0.0, %v899
        %v901 = vpop.f32.mrb[0].mxu0
        %v902 = vpop.f32.mrb[0].mxu0
        %v903 = vpop.f32.mrb[0].mxu0
        %904 = vdwg.mxu0
        %v905 = vunpack.c.l.b16 %v701
        %v906 = vpack.c.b16 %v905, %v905
        %907 = vrot.lane.b32.xlu0 %v906, 120
        %v908 = vpop.permute.xlu0 %907
        %v910 = vsel %vm710, %v701, 0
        %v913 = vsel %vm710, %v908, 0
        %915 = vmatprep.subr.bf16.mxu0 0
        %916 = vmatpush1.bf16.xpose.msra.mxu0 %v913
        %917 = vmatprep.subr.bf16.mxu0 0
        %918 = vmatpush1.bf16.xpose.msra.mxu0 0
        %919 = vmatprep.subr.bf16.mxu0 0
        %920 = vmatpush1.bf16.xpose.msra.mxu0 0
        %921 = vmatprep.subr.bf16.mxu0 0
        %922 = vmatpush1.bf16.xpose.msra.mxu0 0
        %923 = vmatprep.subr.bf16.mxu0 0
        %924 = vmatpush1.bf16.xpose.msra.mxu0 0
        %925 = vmatprep.subr.bf16.mxu0 0
        %926 = vmatpush1.bf16.xpose.msra.mxu0 0
        %927 = vmatprep.subr.bf16.mxu0 0
        %928 = vmatpush1.bf16.xpose.msra.mxu0 0
        %929 = vmatprep.subr.bf16.mxu0 0
        %930 = vmatpush1.bf16.xpose.msra.mxu0 0
        %931 = vmatprep.subr.bf16.mxu0 0
        %932 = vmatpush1.bf16.xpose.msra.mxu0 0
        %933 = vmatprep.subr.bf16.mxu0 0
        %934 = vmatpush1.bf16.xpose.msra.mxu0 0
        %935 = vmatprep.subr.bf16.mxu0 0
        %936 = vmatpush1.bf16.xpose.msra.mxu0 0
        %937 = vmatprep.subr.bf16.mxu0 0
        %938 = vmatpush1.bf16.xpose.msra.mxu0 0
        %939 = vmatprep.subr.bf16.mxu0 0
        %940 = vmatpush1.bf16.xpose.msra.mxu0 0
        %941 = vmatprep.subr.bf16.mxu0 0
        %942 = vmatpush1.bf16.xpose.msra.mxu0 0
        %943 = vmatprep.subr.bf16.mxu0 0
        %944 = vmatpush1.bf16.xpose.msra.mxu0 0
        %945 = vmatprep.subr.bf16.mxu0 0
        %946 = vmatpush1.bf16.xpose.msra.mxu0 0
        %947 = vmatprep.mubr.bf16.mxu0 0
        %948 = vmatmul.mubr.bf16.gmra.mrb[0].mxu0 %v910
        %v949 = vpop.f32.mrb[0].mxu0
        %v950 = vadd.f32 0.0, %v949
        %v951 = vpop.f32.mrb[0].mxu0
        %v952 = vpop.f32.mrb[0].mxu0
        %v953 = vpop.f32.mrb[0].mxu0
        %954 = vdwg.mxu0
        %v955 = vunpack.c.l.b16 %v703
        %v956 = vpack.c.b16 %v955, %v955
        %957 = vrot.lane.b32.xlu0 %v956, 120
        %v958 = vpop.permute.xlu0 %957
        %v960 = vsel %vm710, %v703, 0
        %v963 = vsel %vm710, %v958, 0
        %965 = vmatprep.subr.bf16.mxu0 0
        %966 = vmatpush1.bf16.xpose.msra.mxu0 %v963
        %967 = vmatprep.subr.bf16.mxu0 0
        %968 = vmatpush1.bf16.xpose.msra.mxu0 0
        %969 = vmatprep.subr.bf16.mxu0 0
        %970 = vmatpush1.bf16.xpose.msra.mxu0 0
        %971 = vmatprep.subr.bf16.mxu0 0
        %972 = vmatpush1.bf16.xpose.msra.mxu0 0
        %973 = vmatprep.subr.bf16.mxu0 0
        %974 = vmatpush1.bf16.xpose.msra.mxu0 0
        %975 = vmatprep.subr.bf16.mxu0 0
        %976 = vmatpush1.bf16.xpose.msra.mxu0 0
        %977 = vmatprep.subr.bf16.mxu0 0
        %978 = vmatpush1.bf16.xpose.msra.mxu0 0
        %979 = vmatprep.subr.bf16.mxu0 0
        %980 = vmatpush1.bf16.xpose.msra.mxu0 0
        %981 = vmatprep.subr.bf16.mxu0 0
        %982 = vmatpush1.bf16.xpose.msra.mxu0 0
        %983 = vmatprep.subr.bf16.mxu0 0
        %984 = vmatpush1.bf16.xpose.msra.mxu0 0
        %985 = vmatprep.subr.bf16.mxu0 0
        %986 = vmatpush1.bf16.xpose.msra.mxu0 0
        %987 = vmatprep.subr.bf16.mxu0 0
        %988 = vmatpush1.bf16.xpose.msra.mxu0 0
        %989 = vmatprep.subr.bf16.mxu0 0
        %990 = vmatpush1.bf16.xpose.msra.mxu0 0
        %991 = vmatprep.subr.bf16.mxu0 0
        %992 = vmatpush1.bf16.xpose.msra.mxu0 0
        %993 = vmatprep.subr.bf16.mxu0 0
        %994 = vmatpush1.bf16.xpose.msra.mxu0 0
        %995 = vmatprep.subr.bf16.mxu0 0
        %996 = vmatpush1.bf16.xpose.msra.mxu0 0
        %997 = vmatprep.mubr.bf16.mxu0 0
        %998 = vmatmul.mubr.bf16.gmra.mrb[0].mxu0 %v960
        %v999 = vpop.f32.mrb[0].mxu0
        %v1000 = vadd.f32 0.0, %v999
        %v1001 = vpop.f32.mrb[0].mxu0
        %v1002 = vpop.f32.mrb[0].mxu0
        %v1003 = vpop.f32.mrb[0].mxu0
        %1004 = vdwg.mxu0
        %v1005 = vunpack.c.l.b16 %v705
        %v1006 = vpack.c.b16 %v1005, %v1005
        %1007 = vrot.lane.b32.xlu0 %v1006, 120
        %v1008 = vpop.permute.xlu0 %1007
        %v1010 = vsel %vm710, %v705, 0
        %v1013 = vsel %vm710, %v1008, 0
        %1015 = vmatprep.subr.bf16.mxu0 0
        %1016 = vmatpush1.bf16.xpose.msra.mxu0 %v1013
        %1017 = vmatprep.subr.bf16.mxu0 0
        %1018 = vmatpush1.bf16.xpose.msra.mxu0 0
        %1019 = vmatprep.subr.bf16.mxu0 0
        %1020 = vmatpush1.bf16.xpose.msra.mxu0 0
        %1021 = vmatprep.subr.bf16.mxu0 0
        %1022 = vmatpush1.bf16.xpose.msra.mxu0 0
        %1023 = vmatprep.subr.bf16.mxu0 0
        %1024 = vmatpush1.bf16.xpose.msra.mxu0 0
        %1025 = vmatprep.subr.bf16.mxu0 0
        %1026 = vmatpush1.bf16.xpose.msra.mxu0 0
        %1027 = vmatprep.subr.bf16.mxu0 0
        %1028 = vmatpush1.bf16.xpose.msra.mxu0 0
        %1029 = vmatprep.subr.bf16.mxu0 0
        %1030 = vmatpush1.bf16.xpose.msra.mxu0 0
        %1031 = vmatprep.subr.bf16.mxu0 0
        %1032 = vmatpush1.bf16.xpose.msra.mxu0 0
        %1033 = vmatprep.subr.bf16.mxu0 0
        %1034 = vmatpush1.bf16.xpose.msra.mxu0 0
        %1035 = vmatprep.subr.bf16.mxu0 0
        %1036 = vmatpush1.bf16.xpose.msra.mxu0 0
        %1037 = vmatprep.subr.bf16.mxu0 0
        %1038 = vmatpush1.bf16.xpose.msra.mxu0 0
        %1039 = vmatprep.subr.bf16.mxu0 0
        %1040 = vmatpush1.bf16.xpose.msra.mxu0 0
        %1041 = vmatprep.subr.bf16.mxu0 0
        %1042 = vmatpush1.bf16.xpose.msra.mxu0 0
        %1043 = vmatprep.subr.bf16.mxu0 0
        %1044 = vmatpush1.bf16.xpose.msra.mxu0 0
        %1045 = vmatprep.subr.bf16.mxu0 0
        %1046 = vmatpush1.bf16.xpose.msra.mxu0 0
        %1047 = vmatprep.mubr.bf16.mxu0 0
        %1048 = vmatmul.mubr.bf16.gmra.mrb[0].mxu0 %v1010
        %v1049 = vpop.f32.mrb[0].mxu0
        %v1050 = vadd.f32 0.0, %v1049
        %v1051 = vpop.f32.mrb[0].mxu0
        %v1052 = vpop.f32.mrb[0].mxu0
        %v1053 = vpop.f32.mrb[0].mxu0
        %1054 = vdwg.mxu0
        %v1055 = vunpack.c.l.b16 %v707
        %v1056 = vpack.c.b16 %v1055, %v1055
        %1057 = vrot.lane.b32.xlu0 %v1056, 120
        %v1058 = vpop.permute.xlu0 %1057
        %v1060 = vsel %vm710, %v707, 0
        %v1063 = vsel %vm710, %v1058, 0
        %1065 = vmatprep.subr.bf16.mxu0 0
        %1066 = vmatpush1.bf16.xpose.msra.mxu0 %v1063
        %1067 = vmatprep.subr.bf16.mxu0 0
        %1068 = vmatpush1.bf16.xpose.msra.mxu0 0
        %1069 = vmatprep.subr.bf16.mxu0 0
        %1070 = vmatpush1.bf16.xpose.msra.mxu0 0
        %1071 = vmatprep.subr.bf16.mxu0 0
        %1072 = vmatpush1.bf16.xpose.msra.mxu0 0
        %1073 = vmatprep.subr.bf16.mxu0 0
        %1074 = vmatpush1.bf16.xpose.msra.mxu0 0
        %1075 = vmatprep.subr.bf16.mxu0 0
        %1076 = vmatpush1.bf16.xpose.msra.mxu0 0
        %1077 = vmatprep.subr.bf16.mxu0 0
        %1078 = vmatpush1.bf16.xpose.msra.mxu0 0
        %1079 = vmatprep.subr.bf16.mxu0 0
        %1080 = vmatpush1.bf16.xpose.msra.mxu0 0
        %1081 = vmatprep.subr.bf16.mxu0 0
        %1082 = vmatpush1.bf16.xpose.msra.mxu0 0
        %1083 = vmatprep.subr.bf16.mxu0 0
        %1084 = vmatpush1.bf16.xpose.msra.mxu0 0
        %1085 = vmatprep.subr.bf16.mxu0 0
        %1086 = vmatpush1.bf16.xpose.msra.mxu0 0
        %1087 = vmatprep.subr.bf16.mxu0 0
        %1088 = vmatpush1.bf16.xpose.msra.mxu0 0
        %1089 = vmatprep.subr.bf16.mxu0 0
        %1090 = vmatpush1.bf16.xpose.msra.mxu0 0
        %1091 = vmatprep.subr.bf16.mxu0 0
        %1092 = vmatpush1.bf16.xpose.msra.mxu0 0
        %1093 = vmatprep.subr.bf16.mxu0 0
        %1094 = vmatpush1.bf16.xpose.msra.mxu0 0
        %1095 = vmatprep.subr.bf16.mxu0 0
        %1096 = vmatpush1.bf16.xpose.msra.mxu0 0
        %1097 = vmatprep.mubr.bf16.mxu0 0
        %1098 = vmatmul.mubr.bf16.gmra.mrb[0].mxu0 %v1060
        %v1099 = vpop.f32.mrb[0].mxu0
        %v1100 = vadd.f32 0.0, %v1099
        %v1101 = vpop.f32.mrb[0].mxu0
        %v1102 = vpop.f32.mrb[0].mxu0
        %v1103 = vpop.f32.mrb[0].mxu0
        %1104 = vdwg.mxu0
        %v1105 = vmul.f32 %v752, 0.35355338
        %v1106 = vmul.f32 %v800, 0.35355338
        %v1107 = vmul.f32 %v850, 0.35355338
        %v1108 = vmul.f32 %v900, 0.35355338
        %v1109 = vmul.f32 %v950, 0.35355338
        %v1110 = vmul.f32 %v1000, 0.35355338
        %v1111 = vmul.f32 %v1050, 0.35355338
        %v1112 = vmul.f32 %v1100, 0.35355338
        %v1113 = vld [vmem:[#allocation5] sm:$0x1]
        %v1114 = vld [vmem:[#allocation5 + $0x1] sm:$0x1]
        %v1117 = vlaneseq
        %v1118 = vshrl.u32 %v1117, 7
        %v1119 = vsub.s32 0, %v1118
        %v1120 = vrot.slane %v1113, %v1119
        %v1121 = vlaneseq
        %v1122 = vshrl.u32 %v1121, 7
        %v1123 = vsub.s32 0, %v1122
        %v1124 = vrot.slane %v1114, %v1123
        %v1127 = vadd.f32 %v1105, %v1120
        %v1128 = vadd.f32 %v1106, %v1124
        %v1129 = vadd.f32 %v1107, %v1120
        %v1130 = vadd.f32 %v1108, %v1124
        %v1131 = vadd.f32 %v1109, %v1120
        %v1132 = vadd.f32 %v1110, %v1124
        %v1133 = vadd.f32 %v1111, %v1120
        %v1134 = vadd.f32 %v1112, %v1124
        %v1135 = vsel %vm710, %v1127, -inf
        %1136 = vmax.xlane.f32.xlu0 %v1135
        %v1137 = vpop.xlane.xlu0 %1136
        %v1138 = vsel %vm710, %v1128, -inf
        %1139 = vmax.xlane.f32.xlu0 %v1138
        %v1140 = vpop.xlane.xlu0 %1139
        %v1141 = vsel %vm710, %v1129, -inf
        %1142 = vmax.xlane.f32.xlu0 %v1141
        %v1143 = vpop.xlane.xlu0 %1142
        %v1144 = vsel %vm710, %v1130, -inf
        %1145 = vmax.xlane.f32.xlu0 %v1144
        %v1146 = vpop.xlane.xlu0 %1145
        %v1147 = vsel %vm710, %v1131, -inf
        %1148 = vmax.xlane.f32.xlu0 %v1147
        %v1149 = vpop.xlane.xlu0 %1148
        %v1150 = vsel %vm710, %v1132, -inf
        %1151 = vmax.xlane.f32.xlu0 %v1150
        %v1152 = vpop.xlane.xlu0 %1151
        %v1153 = vsel %vm710, %v1133, -inf
        %1154 = vmax.xlane.f32.xlu0 %v1153
        %v1155 = vpop.xlane.xlu0 %1154
        %v1156 = vsel %vm710, %v1134, -inf
        %1157 = vmax.xlane.f32.xlu0 %v1156
        %v1158 = vpop.xlane.xlu0 %1157
        %v1159 = vsub.f32 %v1127, %v1137
        %v1160 = vsub.f32 %v1128, %v1140
        %v1161 = vsub.f32 %v1129, %v1143
        %v1162 = vsub.f32 %v1130, %v1146
        %v1163 = vsub.f32 %v1131, %v1149
        %v1164 = vsub.f32 %v1132, %v1152
        %v1165 = vsub.f32 %v1133, %v1155
        %v1166 = vsub.f32 %v1134, %v1158
        %v1167 = vmul.f32 %v1159, 1.442695
        %v1168 = vpow.pop %v1167
        %v1169 = vmul.f32 %v1160, 1.442695
        %v1170 = vpow.pop %v1169
        %v1171 = vmul.f32 %v1161, 1.442695
        %v1172 = vpow.pop %v1171
        %v1173 = vmul.f32 %v1162, 1.442695
        %v1174 = vpow.pop %v1173
        %v1175 = vmul.f32 %v1163, 1.442695
        %v1176 = vpow.pop %v1175
        %v1177 = vmul.f32 %v1164, 1.442695
        %v1178 = vpow.pop %v1177
        %v1179 = vmul.f32 %v1165, 1.442695
        %v1180 = vpow.pop %v1179
        %v1181 = vmul.f32 %v1166, 1.442695
        %v1182 = vpow.pop %v1181
        %v1183 = vsel %vm710, %v1168, 0.0
        %1184 = vadd.xlane.f32.xlu0 %v1183
        %v1185 = vpop.xlane.xlu0 %1184
        %v1186 = vsel %vm710, %v1170, 0.0
        %1187 = vadd.xlane.f32.xlu0 %v1186
        %v1188 = vpop.xlane.xlu0 %1187
        %v1189 = vsel %vm710, %v1172, 0.0
        %1190 = vadd.xlane.f32.xlu0 %v1189
        %v1191 = vpop.xlane.xlu0 %1190
        %v1192 = vsel %vm710, %v1174, 0.0
        %1193 = vadd.xlane.f32.xlu0 %v1192
        %v1194 = vpop.xlane.xlu0 %1193
        %v1195 = vsel %vm710, %v1176, 0.0
        %1196 = vadd.xlane.f32.xlu0 %v1195
        %v1197 = vpop.xlane.xlu0 %1196
        %v1198 = vsel %vm710, %v1178, 0.0
        %1199 = vadd.xlane.f32.xlu0 %v1198
        %v1200 = vpop.xlane.xlu0 %1199
        %v1201 = vsel %vm710, %v1180, 0.0
        %1202 = vadd.xlane.f32.xlu0 %v1201
        %v1203 = vpop.xlane.xlu0 %1202
        %v1204 = vsel %vm710, %v1182, 0.0
        %1205 = vadd.xlane.f32.xlu0 %v1204
        %v1206 = vpop.xlane.xlu0 %1205
        %v1207 = vrcp.pop %v1185
        %v1208 = vmul.f32 %v1168, %v1207
        %v1209 = vrcp.pop %v1188
        %v1210 = vmul.f32 %v1170, %v1209
        %v1211 = vrcp.pop %v1191
        %v1212 = vmul.f32 %v1172, %v1211
        %v1213 = vrcp.pop %v1194
        %v1214 = vmul.f32 %v1174, %v1213
        %v1215 = vrcp.pop %v1197
        %v1216 = vmul.f32 %v1176, %v1215
        %v1217 = vrcp.pop %v1200
        %v1218 = vmul.f32 %v1178, %v1217
        %v1219 = vrcp.pop %v1203
        %v1220 = vmul.f32 %v1180, %v1219
        %v1221 = vrcp.pop %v1206
        %v1222 = vmul.f32 %v1182, %v1221
        %v1223 = vpack.c.bf16 %v1208, %v1208
        %v1224 = vpack.c.bf16 %v1210, %v1210
        %v1225 = vpack.c.bf16 %v1212, %v1212
        %v1226 = vpack.c.bf16 %v1214, %v1214
        %v1227 = vpack.c.bf16 %v1216, %v1216
        %v1228 = vpack.c.bf16 %v1218, %v1218
        %v1229 = vpack.c.bf16 %v1220, %v1220
        %v1230 = vpack.c.bf16 %v1222, %v1222
        %1231 = vrot.lane.b32.xlu0 %v694, 112
        %v1232 = vpop.permute.xlu0 %1231
        %v1234 = vsel %vm710, %v1223, 0
        %vm1236 = vcmask 1043456
        %v1238 = vsel %vm1236, %v1232, 0
        %1240 = vmatprep.subr.bf16.mxu0 0
        %1241 = vmatpush1.bf16.msra.mxu0 %v1238
        %1242 = vmatprep.subr.bf16.mxu0 0
        %1243 = vmatpush1.bf16.msra.mxu0 0
        %1244 = vmatprep.subr.bf16.mxu0 0
        %1245 = vmatpush1.bf16.msra.mxu0 0
        %1246 = vmatprep.subr.bf16.mxu0 0
        %1247 = vmatpush1.bf16.msra.mxu0 0
        %1248 = vmatprep.subr.bf16.mxu0 0
        %1249 = vmatpush1.bf16.msra.mxu0 0
        %1250 = vmatprep.subr.bf16.mxu0 0
        %1251 = vmatpush1.bf16.msra.mxu0 0
        %1252 = vmatprep.subr.bf16.mxu0 0
        %1253 = vmatpush1.bf16.msra.mxu0 0
        %1254 = vmatprep.subr.bf16.mxu0 0
        %1255 = vmatpush1.bf16.msra.mxu0 0
        %1256 = vmatprep.subr.bf16.mxu0 0
        %1257 = vmatpush1.bf16.msra.mxu0 0
        %1258 = vmatprep.subr.bf16.mxu0 0
        %1259 = vmatpush1.bf16.msra.mxu0 0
        %1260 = vmatprep.subr.bf16.mxu0 0
        %1261 = vmatpush1.bf16.msra.mxu0 0
        %1262 = vmatprep.subr.bf16.mxu0 0
        %1263 = vmatpush1.bf16.msra.mxu0 0
        %1264 = vmatprep.subr.bf16.mxu0 0
        %1265 = vmatpush1.bf16.msra.mxu0 0
        %1266 = vmatprep.subr.bf16.mxu0 0
        %1267 = vmatpush1.bf16.msra.mxu0 0
        %1268 = vmatprep.subr.bf16.mxu0 0
        %1269 = vmatpush1.bf16.msra.mxu0 0
        %1270 = vmatprep.subr.bf16.mxu0 0
        %1271 = vmatpush1.bf16.msra.mxu0 0
        %1272 = vmatprep.mubr.bf16.mxu0 0
        %1273 = vmatmul.mubr.bf16.gmra.mrb[0].mxu0 %v1234
        %v1274 = vpop.f32.mrb[0].mxu0
        %v1275 = vadd.f32 0.0, %v1274
        %v1276 = vpop.f32.mrb[0].mxu0
        %v1277 = vpop.f32.mrb[0].mxu0
        %v1278 = vpop.f32.mrb[0].mxu0
        %1279 = vdwg.mxu0
        %1280 = vrot.lane.b32.xlu0 %v695, 112
        %v1281 = vpop.permute.xlu0 %1280
        %v1283 = vsel %vm710, %v1224, 0
        %v1286 = vsel %vm1236, %v1281, 0
        %1288 = vmatprep.subr.bf16.mxu0 0
        %1289 = vmatpush1.bf16.msra.mxu0 %v1286
        %1290 = vmatprep.subr.bf16.mxu0 0
        %1291 = vmatpush1.bf16.msra.mxu0 0
        %1292 = vmatprep.subr.bf16.mxu0 0
        %1293 = vmatpush1.bf16.msra.mxu0 0
        %1294 = vmatprep.subr.bf16.mxu0 0
        %1295 = vmatpush1.bf16.msra.mxu0 0
        %1296 = vmatprep.subr.bf16.mxu0 0
        %1297 = vmatpush1.bf16.msra.mxu0 0
        %1298 = vmatprep.subr.bf16.mxu0 0
        %1299 = vmatpush1.bf16.msra.mxu0 0
        %1300 = vmatprep.subr.bf16.mxu0 0
        %1301 = vmatpush1.bf16.msra.mxu0 0
        %1302 = vmatprep.subr.bf16.mxu0 0
        %1303 = vmatpush1.bf16.msra.mxu0 0
        %1304 = vmatprep.subr.bf16.mxu0 0
        %1305 = vmatpush1.bf16.msra.mxu0 0
        %1306 = vmatprep.subr.bf16.mxu0 0
        %1307 = vmatpush1.bf16.msra.mxu0 0
        %1308 = vmatprep.subr.bf16.mxu0 0
        %1309 = vmatpush1.bf16.msra.mxu0 0
        %1310 = vmatprep.subr.bf16.mxu0 0
        %1311 = vmatpush1.bf16.msra.mxu0 0
        %1312 = vmatprep.subr.bf16.mxu0 0
        %1313 = vmatpush1.bf16.msra.mxu0 0
        %1314 = vmatprep.subr.bf16.mxu0 0
        %1315 = vmatpush1.bf16.msra.mxu0 0
        %1316 = vmatprep.subr.bf16.mxu0 0
        %1317 = vmatpush1.bf16.msra.mxu0 0
        %1318 = vmatprep.subr.bf16.mxu0 0
        %1319 = vmatpush1.bf16.msra.mxu0 0
        %1320 = vmatprep.mubr.bf16.mxu0 0
        %1321 = vmatmul.mubr.bf16.gmra.mrb[0].mxu0 %v1283
        %v1322 = vpop.f32.mrb[0].mxu0
        %v1323 = vadd.f32 0.0, %v1322
        %v1324 = vpop.f32.mrb[0].mxu0
        %v1325 = vpop.f32.mrb[0].mxu0
        %v1326 = vpop.f32.mrb[0].mxu0
        %1327 = vdwg.mxu0
        %1328 = vrot.lane.b32.xlu0 %v806, 112
        %v1329 = vpop.permute.xlu0 %1328
        %v1331 = vsel %vm710, %v1225, 0
        %v1334 = vsel %vm1236, %v1329, 0
        %1336 = vmatprep.subr.bf16.mxu0 0
        %1337 = vmatpush1.bf16.msra.mxu0 %v1334
        %1338 = vmatprep.subr.bf16.mxu0 0
        %1339 = vmatpush1.bf16.msra.mxu0 0
        %1340 = vmatprep.subr.bf16.mxu0 0
        %1341 = vmatpush1.bf16.msra.mxu0 0
        %1342 = vmatprep.subr.bf16.mxu0 0
        %1343 = vmatpush1.bf16.msra.mxu0 0
        %1344 = vmatprep.subr.bf16.mxu0 0
        %1345 = vmatpush1.bf16.msra.mxu0 0
        %1346 = vmatprep.subr.bf16.mxu0 0
        %1347 = vmatpush1.bf16.msra.mxu0 0
        %1348 = vmatprep.subr.bf16.mxu0 0
        %1349 = vmatpush1.bf16.msra.mxu0 0
        %1350 = vmatprep.subr.bf16.mxu0 0
        %1351 = vmatpush1.bf16.msra.mxu0 0
        %1352 = vmatprep.subr.bf16.mxu0 0
        %1353 = vmatpush1.bf16.msra.mxu0 0
        %1354 = vmatprep.subr.bf16.mxu0 0
        %1355 = vmatpush1.bf16.msra.mxu0 0
        %1356 = vmatprep.subr.bf16.mxu0 0
        %1357 = vmatpush1.bf16.msra.mxu0 0
        %1358 = vmatprep.subr.bf16.mxu0 0
        %1359 = vmatpush1.bf16.msra.mxu0 0
        %1360 = vmatprep.subr.bf16.mxu0 0
        %1361 = vmatpush1.bf16.msra.mxu0 0
        %1362 = vmatprep.subr.bf16.mxu0 0
        %1363 = vmatpush1.bf16.msra.mxu0 0
        %1364 = vmatprep.subr.bf16.mxu0 0
        %1365 = vmatpush1.bf16.msra.mxu0 0
        %1366 = vmatprep.subr.bf16.mxu0 0
        %1367 = vmatpush1.bf16.msra.mxu0 0
        %1368 = vmatprep.mubr.bf16.mxu0 0
        %1369 = vmatmul.mubr.bf16.gmra.mrb[0].mxu0 %v1331
        %v1370 = vpop.f32.mrb[0].mxu0
        %v1371 = vadd.f32 0.0, %v1370
        %v1372 = vpop.f32.mrb[0].mxu0
        %v1373 = vpop.f32.mrb[0].mxu0
        %v1374 = vpop.f32.mrb[0].mxu0
        %1375 = vdwg.mxu0
        %1376 = vrot.lane.b32.xlu0 %v856, 112
        %v1377 = vpop.permute.xlu0 %1376
        %v1379 = vsel %vm710, %v1226, 0
        %v1382 = vsel %vm1236, %v1377, 0
        %1384 = vmatprep.subr.bf16.mxu0 0
        %1385 = vmatpush1.bf16.msra.mxu0 %v1382
        %1386 = vmatprep.subr.bf16.mxu0 0
        %1387 = vmatpush1.bf16.msra.mxu0 0
        %1388 = vmatprep.subr.bf16.mxu0 0
        %1389 = vmatpush1.bf16.msra.mxu0 0
        %1390 = vmatprep.subr.bf16.mxu0 0
        %1391 = vmatpush1.bf16.msra.mxu0 0
        %1392 = vmatprep.subr.bf16.mxu0 0
        %1393 = vmatpush1.bf16.msra.mxu0 0
        %1394 = vmatprep.subr.bf16.mxu0 0
        %1395 = vmatpush1.bf16.msra.mxu0 0
        %1396 = vmatprep.subr.bf16.mxu0 0
        %1397 = vmatpush1.bf16.msra.mxu0 0
        %1398 = vmatprep.subr.bf16.mxu0 0
        %1399 = vmatpush1.bf16.msra.mxu0 0
        %1400 = vmatprep.subr.bf16.mxu0 0
        %1401 = vmatpush1.bf16.msra.mxu0 0
        %1402 = vmatprep.subr.bf16.mxu0 0
        %1403 = vmatpush1.bf16.msra.mxu0 0
        %1404 = vmatprep.subr.bf16.mxu0 0
        %1405 = vmatpush1.bf16.msra.mxu0 0
        %1406 = vmatprep.subr.bf16.mxu0 0
        %1407 = vmatpush1.bf16.msra.mxu0 0
        %1408 = vmatprep.subr.bf16.mxu0 0
        %1409 = vmatpush1.bf16.msra.mxu0 0
        %1410 = vmatprep.subr.bf16.mxu0 0
        %1411 = vmatpush1.bf16.msra.mxu0 0
        %1412 = vmatprep.subr.bf16.mxu0 0
        %1413 = vmatpush1.bf16.msra.mxu0 0
        %1414 = vmatprep.subr.bf16.mxu0 0
        %1415 = vmatpush1.bf16.msra.mxu0 0
        %1416 = vmatprep.mubr.bf16.mxu0 0
        %1417 = vmatmul.mubr.bf16.gmra.mrb[0].mxu0 %v1379
        %v1418 = vpop.f32.mrb[0].mxu0
        %v1419 = vadd.f32 0.0, %v1418
        %v1420 = vpop.f32.mrb[0].mxu0
        %v1421 = vpop.f32.mrb[0].mxu0
        %v1422 = vpop.f32.mrb[0].mxu0
        %1423 = vdwg.mxu0
        %1424 = vrot.lane.b32.xlu0 %v906, 112
        %v1425 = vpop.permute.xlu0 %1424
        %v1427 = vsel %vm710, %v1227, 0
        %v1430 = vsel %vm1236, %v1425, 0
        %1432 = vmatprep.subr.bf16.mxu0 0
        %1433 = vmatpush1.bf16.msra.mxu0 %v1430
        %1434 = vmatprep.subr.bf16.mxu0 0
        %1435 = vmatpush1.bf16.msra.mxu0 0
        %1436 = vmatprep.subr.bf16.mxu0 0
        %1437 = vmatpush1.bf16.msra.mxu0 0
        %1438 = vmatprep.subr.bf16.mxu0 0
        %1439 = vmatpush1.bf16.msra.mxu0 0
        %1440 = vmatprep.subr.bf16.mxu0 0
        %1441 = vmatpush1.bf16.msra.mxu0 0
        %1442 = vmatprep.subr.bf16.mxu0 0
        %1443 = vmatpush1.bf16.msra.mxu0 0
        %1444 = vmatprep.subr.bf16.mxu0 0
        %1445 = vmatpush1.bf16.msra.mxu0 0
        %1446 = vmatprep.subr.bf16.mxu0 0
        %1447 = vmatpush1.bf16.msra.mxu0 0
        %1448 = vmatprep.subr.bf16.mxu0 0
        %1449 = vmatpush1.bf16.msra.mxu0 0
        %1450 = vmatprep.subr.bf16.mxu0 0
        %1451 = vmatpush1.bf16.msra.mxu0 0
        %1452 = vmatprep.subr.bf16.mxu0 0
        %1453 = vmatpush1.bf16.msra.mxu0 0
        %1454 = vmatprep.subr.bf16.mxu0 0
        %1455 = vmatpush1.bf16.msra.mxu0 0
        %1456 = vmatprep.subr.bf16.mxu0 0
        %1457 = vmatpush1.bf16.msra.mxu0 0
        %1458 = vmatprep.subr.bf16.mxu0 0
        %1459 = vmatpush1.bf16.msra.mxu0 0
        %1460 = vmatprep.subr.bf16.mxu0 0
        %1461 = vmatpush1.bf16.msra.mxu0 0
        %1462 = vmatprep.subr.bf16.mxu0 0
        %1463 = vmatpush1.bf16.msra.mxu0 0
        %1464 = vmatprep.mubr.bf16.mxu0 0
        %1465 = vmatmul.mubr.bf16.gmra.mrb[0].mxu0 %v1427
        %v1466 = vpop.f32.mrb[0].mxu0
        %v1467 = vadd.f32 0.0, %v1466
        %v1468 = vpop.f32.mrb[0].mxu0
        %v1469 = vpop.f32.mrb[0].mxu0
        %v1470 = vpop.f32.mrb[0].mxu0
        %1471 = vdwg.mxu0
        %1472 = vrot.lane.b32.xlu0 %v956, 112
        %v1473 = vpop.permute.xlu0 %1472
        %v1475 = vsel %vm710, %v1228, 0
        %v1478 = vsel %vm1236, %v1473, 0
        %1480 = vmatprep.subr.bf16.mxu0 0
        %1481 = vmatpush1.bf16.msra.mxu0 %v1478
        %1482 = vmatprep.subr.bf16.mxu0 0
        %1483 = vmatpush1.bf16.msra.mxu0 0
        %1484 = vmatprep.subr.bf16.mxu0 0
        %1485 = vmatpush1.bf16.msra.mxu0 0
        %1486 = vmatprep.subr.bf16.mxu0 0
        %1487 = vmatpush1.bf16.msra.mxu0 0
        %1488 = vmatprep.subr.bf16.mxu0 0
        %1489 = vmatpush1.bf16.msra.mxu0 0
        %1490 = vmatprep.subr.bf16.mxu0 0
        %1491 = vmatpush1.bf16.msra.mxu0 0
        %1492 = vmatprep.subr.bf16.mxu0 0
        %1493 = vmatpush1.bf16.msra.mxu0 0
        %1494 = vmatprep.subr.bf16.mxu0 0
        %1495 = vmatpush1.bf16.msra.mxu0 0
        %1496 = vmatprep.subr.bf16.mxu0 0
        %1497 = vmatpush1.bf16.msra.mxu0 0
        %1498 = vmatprep.subr.bf16.mxu0 0
        %1499 = vmatpush1.bf16.msra.mxu0 0
        %1500 = vmatprep.subr.bf16.mxu0 0
        %1501 = vmatpush1.bf16.msra.mxu0 0
        %1502 = vmatprep.subr.bf16.mxu0 0
        %1503 = vmatpush1.bf16.msra.mxu0 0
        %1504 = vmatprep.subr.bf16.mxu0 0
        %1505 = vmatpush1.bf16.msra.mxu0 0
        %1506 = vmatprep.subr.bf16.mxu0 0
        %1507 = vmatpush1.bf16.msra.mxu0 0
        %1508 = vmatprep.subr.bf16.mxu0 0
        %1509 = vmatpush1.bf16.msra.mxu0 0
        %1510 = vmatprep.subr.bf16.mxu0 0
        %1511 = vmatpush1.bf16.msra.mxu0 0
        %1512 = vmatprep.mubr.bf16.mxu0 0
        %1513 = vmatmul.mubr.bf16.gmra.mrb[0].mxu0 %v1475
        %v1514 = vpop.f32.mrb[0].mxu0
        %v1515 = vadd.f32 0.0, %v1514
        %v1516 = vpop.f32.mrb[0].mxu0
        %v1517 = vpop.f32.mrb[0].mxu0
        %v1518 = vpop.f32.mrb[0].mxu0
        %1519 = vdwg.mxu0
        %1520 = vrot.lane.b32.xlu0 %v1006, 112
        %v1521 = vpop.permute.xlu0 %1520
        %v1523 = vsel %vm710, %v1229, 0
        %v1526 = vsel %vm1236, %v1521, 0
        %1528 = vmatprep.subr.bf16.mxu0 0
        %1529 = vmatpush1.bf16.msra.mxu0 %v1526
        %1530 = vmatprep.subr.bf16.mxu0 0
        %1531 = vmatpush1.bf16.msra.mxu0 0
        %1532 = vmatprep.subr.bf16.mxu0 0
        %1533 = vmatpush1.bf16.msra.mxu0 0
        %1534 = vmatprep.subr.bf16.mxu0 0
        %1535 = vmatpush1.bf16.msra.mxu0 0
        %1536 = vmatprep.subr.bf16.mxu0 0
        %1537 = vmatpush1.bf16.msra.mxu0 0
        %1538 = vmatprep.subr.bf16.mxu0 0
        %1539 = vmatpush1.bf16.msra.mxu0 0
        %1540 = vmatprep.subr.bf16.mxu0 0
        %1541 = vmatpush1.bf16.msra.mxu0 0
        %1542 = vmatprep.subr.bf16.mxu0 0
        %1543 = vmatpush1.bf16.msra.mxu0 0
        %1544 = vmatprep.subr.bf16.mxu0 0
        %1545 = vmatpush1.bf16.msra.mxu0 0
        %1546 = vmatprep.subr.bf16.mxu0 0
        %1547 = vmatpush1.bf16.msra.mxu0 0
        %1548 = vmatprep.subr.bf16.mxu0 0
        %1549 = vmatpush1.bf16.msra.mxu0 0
        %1550 = vmatprep.subr.bf16.mxu0 0
        %1551 = vmatpush1.bf16.msra.mxu0 0
        %1552 = vmatprep.subr.bf16.mxu0 0
        %1553 = vmatpush1.bf16.msra.mxu0 0
        %1554 = vmatprep.subr.bf16.mxu0 0
        %1555 = vmatpush1.bf16.msra.mxu0 0
        %1556 = vmatprep.subr.bf16.mxu0 0
        %1557 = vmatpush1.bf16.msra.mxu0 0
        %1558 = vmatprep.subr.bf16.mxu0 0
        %1559 = vmatpush1.bf16.msra.mxu0 0
        %1560 = vmatprep.mubr.bf16.mxu0 0
        %1561 = vmatmul.mubr.bf16.gmra.mrb[0].mxu0 %v1523
        %v1562 = vpop.f32.mrb[0].mxu0
        %v1563 = vadd.f32 0.0, %v1562
        %v1564 = vpop.f32.mrb[0].mxu0
        %v1565 = vpop.f32.mrb[0].mxu0
        %v1566 = vpop.f32.mrb[0].mxu0
        %1567 = vdwg.mxu0
        %1568 = vrot.lane.b32.xlu0 %v1056, 112
        %v1569 = vpop.permute.xlu0 %1568
        %v1571 = vsel %vm710, %v1230, 0
        %v1574 = vsel %vm1236, %v1569, 0
        %1576 = vmatprep.subr.bf16.mxu0 0
        %1577 = vmatpush1.bf16.msra.mxu0 %v1574
        %1578 = vmatprep.subr.bf16.mxu0 0
        %1579 = vmatpush1.bf16.msra.mxu0 0
        %1580 = vmatprep.subr.bf16.mxu0 0
        %1581 = vmatpush1.bf16.msra.mxu0 0
        %1582 = vmatprep.subr.bf16.mxu0 0
        %1583 = vmatpush1.bf16.msra.mxu0 0
        %1584 = vmatprep.subr.bf16.mxu0 0
        %1585 = vmatpush1.bf16.msra.mxu0 0
        %1586 = vmatprep.subr.bf16.mxu0 0
        %1587 = vmatpush1.bf16.msra.mxu0 0
        %1588 = vmatprep.subr.bf16.mxu0 0
        %1589 = vmatpush1.bf16.msra.mxu0 0
        %1590 = vmatprep.subr.bf16.mxu0 0
        %1591 = vmatpush1.bf16.msra.mxu0 0
        %1592 = vmatprep.subr.bf16.mxu0 0
        %1593 = vmatpush1.bf16.msra.mxu0 0
        %1594 = vmatprep.subr.bf16.mxu0 0
        %1595 = vmatpush1.bf16.msra.mxu0 0
        %1596 = vmatprep.subr.bf16.mxu0 0
        %1597 = vmatpush1.bf16.msra.mxu0 0
        %1598 = vmatprep.subr.bf16.mxu0 0
        %1599 = vmatpush1.bf16.msra.mxu0 0
        %1600 = vmatprep.subr.bf16.mxu0 0
        %1601 = vmatpush1.bf16.msra.mxu0 0
        %1602 = vmatprep.subr.bf16.mxu0 0
        %1603 = vmatpush1.bf16.msra.mxu0 0
        %1604 = vmatprep.subr.bf16.mxu0 0
        %1605 = vmatpush1.bf16.msra.mxu0 0
        %1606 = vmatprep.subr.bf16.mxu0 0
        %1607 = vmatpush1.bf16.msra.mxu0 0
        %1608 = vmatprep.mubr.bf16.mxu0 0
        %1609 = vmatmul.mubr.bf16.gmra.mrb[0].mxu0 %v1571
        %v1610 = vpop.f32.mrb[0].mxu0
        %v1611 = vadd.f32 0.0, %v1610
        %v1612 = vpop.f32.mrb[0].mxu0
        %v1613 = vpop.f32.mrb[0].mxu0
        %v1614 = vpop.f32.mrb[0].mxu0
        %1615 = vdwg.mxu0
        %v1616 = vpack.c.bf16 %v1275, %v1275
        %v1617 = vpack.c.bf16 %v1323, %v1323
        %v1618 = vpack.c.bf16 %v1371, %v1371
        %v1619 = vpack.c.bf16 %v1419, %v1419
        %v1620 = vpack.c.bf16 %v1467, %v1467
        %v1621 = vpack.c.bf16 %v1515, %v1515
        %v1622 = vpack.c.bf16 %v1563, %v1563
        %v1623 = vpack.c.bf16 %v1611, %v1611
        %v1626 = vunpack.c.l.b16 %v1616
        %v1627 = vunpack.c.l.b16 %v1617
        %v1628 = vpack.c.b16 %v1627, %v1626
        %v1631 = vunpack.c.l.b16 %v1618
        %v1632 = vunpack.c.l.b16 %v1619
        %v1633 = vpack.c.b16 %v1632, %v1631
        %1634 = vrot.lane.b32.xlu0 %v1633, 8
        %v1635 = vpop.permute.xlu0 %1634
        %v1638 = vunpack.c.l.b16 %v1620
        %v1639 = vunpack.c.l.b16 %v1621
        %v1640 = vpack.c.b16 %v1639, %v1638
        %1641 = vrot.lane.b32.xlu0 %v1640, 16
        %v1642 = vpop.permute.xlu0 %1641
        %v1645 = vunpack.c.l.b16 %v1622
        %v1646 = vunpack.c.l.b16 %v1623
        %v1647 = vpack.c.b16 %v1646, %v1645
        %1648 = vrot.lane.b32.xlu0 %v1647, 24
        %v1649 = vpop.permute.xlu0 %1648
        %v1652 = vsel %vm710, %v1628, %v1635
        %vm1653 = vcmask 130048
        %v1655 = vsel %vm1653, %v1652, %v1642
        %vm1656 = vcmask 195584
        %v1658 = vsel %vm1656, %v1655, %v1649
        %v1659 = vld [vmem:[%s515] sm:$0xf]
        %v1660 = vld [vmem:[%s515 + $0x4] sm:$0xf]
        %v1661 = vld [vmem:[%s515 + $0x8] sm:$0xf]
        %v1662 = vld [vmem:[%s515 + $0xc] sm:$0xf]
        %v1663 = vlaneseq
        %v1664 = vshrl.u32 %v1663, 7
        %v1665 = vsub.s32 1, %v1664
        %v1666 = vrot.slane %v615, %v1665
        %v1671 = vunpack.c.l.b16 %v1659
        %v1672 = vunpack.c.l.b16 %v1660
        %v1673 = vunpack.c.l.b16 %v1661
        %v1674 = vunpack.c.l.b16 %v1662
        %v1675 = vpack.c.b16 %v1672, %v1671
        %v1676 = vpack.c.b16 %v1674, %v1673
        %v1679 = vsel %vm645, %v1658, 0
        %1681 = vmatprep.subr.bf16.mxu0 0
        %1682 = vmatpush1.bf16.msra.mxu0 %v1675
        %1683 = vmatprep.subr.bf16.mxu0 0
        %1684 = vmatpush1.bf16.msra.mxu0 %v1676
        %1685 = vmatprep.subr.bf16.mxu0 0
        %1686 = vmatpush1.bf16.msra.mxu0 0
        %1687 = vmatprep.subr.bf16.mxu0 0
        %1688 = vmatpush1.bf16.msra.mxu0 0
        %1689 = vmatprep.subr.bf16.mxu0 0
        %1690 = vmatpush1.bf16.msra.mxu0 0
        %1691 = vmatprep.subr.bf16.mxu0 0
        %1692 = vmatpush1.bf16.msra.mxu0 0
        %1693 = vmatprep.subr.bf16.mxu0 0
        %1694 = vmatpush1.bf16.msra.mxu0 0
        %1695 = vmatprep.subr.bf16.mxu0 0
        %1696 = vmatpush1.bf16.msra.mxu0 0
        %1697 = vmatprep.subr.bf16.mxu0 0
        %1698 = vmatpush1.bf16.msra.mxu0 0
        %1699 = vmatprep.subr.bf16.mxu0 0
        %1700 = vmatpush1.bf16.msra.mxu0 0
        %1701 = vmatprep.subr.bf16.mxu0 0
        %1702 = vmatpush1.bf16.msra.mxu0 0
        %1703 = vmatprep.subr.bf16.mxu0 0
        %1704 = vmatpush1.bf16.msra.mxu0 0
        %1705 = vmatprep.subr.bf16.mxu0 0
        %1706 = vmatpush1.bf16.msra.mxu0 0
        %1707 = vmatprep.subr.bf16.mxu0 0
        %1708 = vmatpush1.bf16.msra.mxu0 0
        %1709 = vmatprep.subr.bf16.mxu0 0
        %1710 = vmatpush1.bf16.msra.mxu0 0
        %1711 = vmatprep.subr.bf16.mxu0 0
        %1712 = vmatpush1.bf16.msra.mxu0 0
        %1713 = vmatprep.mubr.bf16.mxu0 0
        %1714 = vmatmul.mubr.bf16.gmra.mrb[0].mxu0 %v1679
        %v1715 = vpop.f32.mrb[0].mxu0
        %v1716 = vadd.f32 %v1666, %v1715
        %v1717 = vpop.f32.mrb[0].mxu0
        %v1718 = vpop.f32.mrb[0].mxu0
        %v1719 = vadd.f32 %v1666, %v1718
        %v1720 = vpop.f32.mrb[0].mxu0
        %1721 = vdwg.mxu0
        %v1722 = vadd.f32 %v618, %v1716
        %v1723 = vadd.f32 %v619, %v1719
        %v1724 = vsel %vm645, %v1722, 0.0
        %1725 = vadd.xlane.f32.xlu0 %v1724
        %v1726 = vpop.xlane.xlu0 %1725
        %v1727 = vsel %vm645, %v1723, 0.0
        %1728 = vadd.xlane.f32.xlu0 %v1727
        %v1729 = vpop.xlane.xlu0 %1728
        %v1730 = vrcp.pop 32.0
        %v1731 = vmul.f32 %v1726, %v1730
        %v1732 = vmul.f32 %v1729, %v1730
        %v1733 = vsub.f32 %v1722, %v1731
        %v1734 = vsub.f32 %v1723, %v1732
        %v1735 = vmul.f32 %v1733, %v1733
        %v1736 = vmul.f32 %v1734, %v1734
        %v1737 = vsel %vm645, %v1735, 0.0
        %1738 = vadd.xlane.f32.xlu0 %v1737
        %v1739 = vpop.xlane.xlu0 %1738
        %v1740 = vsel %vm645, %v1736, 0.0
        %1741 = vadd.xlane.f32.xlu0 %v1740
        %v1742 = vpop.xlane.xlu0 %1741
        %v1743 = vmul.f32 %v1739, %v1730
        %v1744 = vmul.f32 %v1742, %v1730
        %v1745 = vadd.f32 %v1743, 1e-05
        %v1746 = vadd.f32 %v1744, 1e-05
        %v1747 = vrsqrt.pop %v1745
        %v1748 = vrsqrt.pop %v1746
        %v1749 = vmul.f32 %v1733, %v1747
        %v1750 = vmul.f32 %v1734, %v1748
        %v1751 = vlaneseq
        %v1752 = vshrl.u32 %v1751, 7
        %v1753 = vsub.s32 2, %v1752
        %v1754 = vrot.slane %v615, %v1753
        %v1755 = vmul.f32 %v1749, %v1754
        %v1756 = vmul.f32 %v1750, %v1754
        %v1757 = vlaneseq
        %v1758 = vshrl.u32 %v1757, 7
        %v1759 = vsub.s32 3, %v1758
        %v1760 = vrot.slane %v615, %v1759
        %v1761 = vadd.f32 %v1755, %v1760
        %v1762 = vadd.f32 %v1756, %v1760
        %v1763 = vpack.c.bf16 %v1762, %v1761
        %v1764 = vld [vmem:[%s524] sm:$0xf]
        %v1765 = vld [vmem:[%s524 + $0x4] sm:$0xf]
        %v1766 = vld [vmem:[%s524 + $0x8] sm:$0xf]
        %v1767 = vld [vmem:[%s524 + $0xc] sm:$0xf]
        %v1768 = vlaneseq
        %v1769 = vshrl.u32 %v1768, 7
        %v1770 = vsub.s32 4, %v1769
        %v1771 = vrot.slane %v615, %v1770
        %v1776 = vunpack.c.l.b16 %v1764
        %v1777 = vunpack.c.l.b16 %v1765
        %v1778 = vunpack.c.l.b16 %v1766
        %v1779 = vunpack.c.l.b16 %v1767
        %v1780 = vpack.c.b16 %v1777, %v1776
        %v1781 = vpack.c.b16 %v1779, %v1778
        %v1785 = vsel %vm645, %v1763, 0
        %1787 = vmatprep.subr.bf16.mxu0 0
        %1788 = vmatpush1.bf16.msra.mxu0 %v1780
        %1789 = vmatprep.subr.bf16.mxu0 0
        %1790 = vmatpush1.bf16.msra.mxu0 %v1781
        %1791 = vmatprep.subr.bf16.mxu0 0
        %1792 = vmatpush1.bf16.msra.mxu0 0
        %1793 = vmatprep.subr.bf16.mxu0 0
        %1794 = vmatpush1.bf16.msra.mxu0 0
        %1795 = vmatprep.subr.bf16.mxu0 0
        %1796 = vmatpush1.bf16.msra.mxu0 0
        %1797 = vmatprep.subr.bf16.mxu0 0
        %1798 = vmatpush1.bf16.msra.mxu0 0
        %1799 = vmatprep.subr.bf16.mxu0 0
        %1800 = vmatpush1.bf16.msra.mxu0 0
        %1801 = vmatprep.subr.bf16.mxu0 0
        %1802 = vmatpush1.bf16.msra.mxu0 0
        %1803 = vmatprep.subr.bf16.mxu0 0
        %1804 = vmatpush1.bf16.msra.mxu0 0
        %1805 = vmatprep.subr.bf16.mxu0 0
        %1806 = vmatpush1.bf16.msra.mxu0 0
        %1807 = vmatprep.subr.bf16.mxu0 0
        %1808 = vmatpush1.bf16.msra.mxu0 0
        %1809 = vmatprep.subr.bf16.mxu0 0
        %1810 = vmatpush1.bf16.msra.mxu0 0
        %1811 = vmatprep.subr.bf16.mxu0 0
        %1812 = vmatpush1.bf16.msra.mxu0 0
        %1813 = vmatprep.subr.bf16.mxu0 0
        %1814 = vmatpush1.bf16.msra.mxu0 0
        %1815 = vmatprep.subr.bf16.mxu0 0
        %1816 = vmatpush1.bf16.msra.mxu0 0
        %1817 = vmatprep.subr.bf16.mxu0 0
        %1818 = vmatpush1.bf16.msra.mxu0 0
        %1819 = vmatprep.mubr.bf16.mxu0 0
        %1820 = vmatmul.mubr.bf16.gmra.mrb[0].mxu0 %v1785
        %v1821 = vpop.f32.mrb[0].mxu0
        %v1822 = vadd.f32 %v1771, %v1821
        %v1823 = vpop.f32.mrb[0].mxu0
        %v1824 = vpop.f32.mrb[0].mxu0
        %v1825 = vadd.f32 %v1771, %v1824
        %v1826 = vpop.f32.mrb[0].mxu0
        %1827 = vdwg.mxu0
        %v1828 = vmax.f32 %v1822, 0.0
        %v1829 = vmax.f32 %v1825, 0.0
        %v1830 = vpack.c.bf16 %v1829, %v1828
        %v1831 = vld [vmem:[%s533] sm:$0xf]
        %v1832 = vld [vmem:[%s533 + $0x4] sm:$0xf]
        %v1833 = vld [vmem:[%s533 + $0x8] sm:$0xf]
        %v1834 = vld [vmem:[%s533 + $0xc] sm:$0xf]
        %v1835 = vld [vmem:[%s533 + $0x10] sm:$0xf]
        %v1836 = vld [vmem:[%s533 + $0x14] sm:$0xf]
        %v1837 = vld [vmem:[%s533 + $0x18] sm:$0xf]
        %v1838 = vld [vmem:[%s533 + $0x1c] sm:$0xf]
        %v1839 = vlaneseq
        %v1840 = vshrl.u32 %v1839, 7
        %v1841 = vsub.s32 5, %v1840
        %v1842 = vrot.slane %v615, %v1841
        %v1851 = vunpack.c.l.b16 %v1831
        %v1852 = vunpack.c.l.b16 %v1832
        %v1853 = vunpack.c.l.b16 %v1833
        %v1854 = vunpack.c.l.b16 %v1834
        %v1855 = vunpack.c.l.b16 %v1835
        %v1856 = vunpack.c.l.b16 %v1836
        %v1857 = vunpack.c.l.b16 %v1837
        %v1858 = vunpack.c.l.b16 %v1838
        %v1859 = vpack.c.b16 %v1852, %v1851
        %v1860 = vpack.c.b16 %v1854, %v1853
        %v1861 = vpack.c.b16 %v1856, %v1855
        %v1862 = vpack.c.b16 %v1858, %v1857
        %vm1867 = vcmask 523264
        %v1869 = vsel %vm1867, %v1830, 0
        %1871 = vmatprep.subr.bf16.mxu0 0
        %1872 = vmatpush1.bf16.msra.mxu0 %v1859
        %1873 = vmatprep.subr.bf16.mxu0 0
        %1874 = vmatpush1.bf16.msra.mxu0 %v1860
        %1875 = vmatprep.subr.bf16.mxu0 0
        %1876 = vmatpush1.bf16.msra.mxu0 %v1861
        %1877 = vmatprep.subr.bf16.mxu0 0
        %1878 = vmatpush1.bf16.msra.mxu0 %v1862
        %1879 = vmatprep.subr.bf16.mxu0 0
        %1880 = vmatpush1.bf16.msra.mxu0 0
        %1881 = vmatprep.subr.bf16.mxu0 0
        %1882 = vmatpush1.bf16.msra.mxu0 0
        %1883 = vmatprep.subr.bf16.mxu0 0
        %1884 = vmatpush1.bf16.msra.mxu0 0
        %1885 = vmatprep.subr.bf16.mxu0 0
        %1886 = vmatpush1.bf16.msra.mxu0 0
        %1887 = vmatprep.subr.bf16.mxu0 0
        %1888 = vmatpush1.bf16.msra.mxu0 0
        %1889 = vmatprep.subr.bf16.mxu0 0
        %1890 = vmatpush1.bf16.msra.mxu0 0
        %1891 = vmatprep.subr.bf16.mxu0 0
        %1892 = vmatpush1.bf16.msra.mxu0 0
        %1893 = vmatprep.subr.bf16.mxu0 0
        %1894 = vmatpush1.bf16.msra.mxu0 0
        %1895 = vmatprep.subr.bf16.mxu0 0
        %1896 = vmatpush1.bf16.msra.mxu0 0
        %1897 = vmatprep.subr.bf16.mxu0 0
        %1898 = vmatpush1.bf16.msra.mxu0 0
        %1899 = vmatprep.subr.bf16.mxu0 0
        %1900 = vmatpush1.bf16.msra.mxu0 0
        %1901 = vmatprep.subr.bf16.mxu0 0
        %1902 = vmatpush1.bf16.msra.mxu0 0
        %1903 = vmatprep.mubr.bf16.mxu0 0
        %1904 = vmatmul.mubr.bf16.gmra.mrb[0].mxu0 %v1869
        %v1905 = vpop.f32.mrb[0].mxu0
        %v1906 = vadd.f32 %v1842, %v1905
        %v1907 = vpop.f32.mrb[0].mxu0
        %v1908 = vpop.f32.mrb[0].mxu0
        %v1909 = vadd.f32 %v1842, %v1908
        %v1910 = vpop.f32.mrb[0].mxu0
        %1911 = vdwg.mxu0
        %v1912 = vadd.f32 %v1761, %v1906
        %v1913 = vadd.f32 %v1762, %v1909
        %v1914 = vsel %vm645, %v1912, 0.0
        %1915 = vadd.xlane.f32.xlu0 %v1914
        %v1916 = vpop.xlane.xlu0 %1915
        %v1917 = vsel %vm645, %v1913, 0.0
        %1918 = vadd.xlane.f32.xlu0 %v1917
        %v1919 = vpop.xlane.xlu0 %1918
        %v1920 = vmul.f32 %v1916, %v1730
        %v1921 = vmul.f32 %v1919, %v1730
        %v1922 = vsub.f32 %v1912, %v1920
        %v1923 = vsub.f32 %v1913, %v1921
        %v1924 = vmul.f32 %v1922, %v1922
        %v1925 = vmul.f32 %v1923, %v1923
        %v1926 = vsel %vm645, %v1924, 0.0
        %1927 = vadd.xlane.f32.xlu0 %v1926
        %v1928 = vpop.xlane.xlu0 %1927
        %v1929 = vsel %vm645, %v1925, 0.0
        %1930 = vadd.xlane.f32.xlu0 %v1929
        %v1931 = vpop.xlane.xlu0 %1930
        %v1932 = vmul.f32 %v1928, %v1730
        %v1933 = vmul.f32 %v1931, %v1730
        %v1934 = vadd.f32 %v1932, 1e-05
        %v1935 = vadd.f32 %v1933, 1e-05
        %v1936 = vrsqrt.pop %v1934
        %v1937 = vrsqrt.pop %v1935
        %v1938 = vmul.f32 %v1922, %v1936
        %v1939 = vmul.f32 %v1923, %v1937
        %v1940 = vlaneseq
        %v1941 = vshrl.u32 %v1940, 7
        %v1942 = vsub.s32 6, %v1941
        %v1943 = vrot.slane %v615, %v1942
        %v1944 = vmul.f32 %v1938, %v1943
        %v1945 = vmul.f32 %v1939, %v1943
        %v1946 = vlaneseq
        %v1947 = vshrl.u32 %v1946, 7
        %v1948 = vsub.s32 7, %v1947
        %v1949 = vrot.slane %v615, %v1948
        %v1950 = vadd.f32 %v1944, %v1949
        %v1951 = vadd.f32 %v1945, %v1949
        %v1952 = vpack.c.bf16 %v1950, %v1950
        %v1953 = vpack.c.bf16 %v1951, %v1951
        %vm1954 = vcmask 257024
        %1955 = vst.msk [vmem:[#allocation15] sm:$0xf] %vm1954, %v1952
        %1956 = vst.msk [vmem:[#allocation15 + $0x4] sm:$0xf] %vm1954, %v1953
        %p1957 = scmp.eq.s32.totalorder %s32, 1
        // Predicated region
        $region97: #{tpu_custom_call.1} parent=55 // pred_check
          %p1958 = pneg %p1957
        $region98: #{tpu_custom_call.1} parent=55 // pred_check_branch
          %1960 = sbr.rel (%p1958) target = $region100
        $region99: #{tpu_custom_call.1} parent=55 // pred_region
          %v1961 = vld [vmem:[#allocation12] sm:$0xf]
          %v1962 = vld [vmem:[#allocation12 + $0x4] sm:$0xf]
          %v1963 = vld [vmem:[#allocation12 + $0x8] sm:$0xf]
          %v1964 = vld [vmem:[#allocation12 + $0xc] sm:$0xf]
          %v1965 = vld [vmem:[#allocation13] sm:$0x1]
          %v1967 = vlaneseq
          %v1968 = vshrl.u32 %v1967, 7
          %v1969 = vsub.s32 0, %v1968
          %v1970 = vrot.slane %v1965, %v1969
          %v1974 = vunpack.c.l.b16 %v1952
          %v1975 = vunpack.c.l.b16 %v1953
          %v1976 = vrot.slane %v1975, 7
          %vm1977 = vcmask 1041409
          %v1978 = vsel %vm1977, %v1976, %v1974
          %v1979 = vpack.c.b16 %v1978, %v1978
          %v1984 = vunpack.c.l.b16 %v1961
          %v1985 = vunpack.c.l.b16 %v1962
          %v1986 = vunpack.c.l.b16 %v1963
          %v1987 = vunpack.c.l.b16 %v1964
          %v1988 = vpack.c.b16 %v1985, %v1984
          %v1989 = vpack.c.b16 %v1987, %v1986
          %v1993 = vsel %vm645, %v1979, 0
          %1995 = vmatprep.subr.bf16.mxu0 0
          %1996 = vmatpush1.bf16.msra.mxu0 %v1988
          %1997 = vmatprep.subr.bf16.mxu0 0
          %1998 = vmatpush1.bf16.msra.mxu0 %v1989
          %1999 = vmatprep.subr.bf16.mxu0 0
          %2000 = vmatpush1.bf16.msra.mxu0 0
          %2001 = vmatprep.subr.bf16.mxu0 0
          %2002 = vmatpush1.bf16.msra.mxu0 0
          %2003 = vmatprep.subr.bf16.mxu0 0
          %2004 = vmatpush1.bf16.msra.mxu0 0
          %2005 = vmatprep.subr.bf16.mxu0 0
          %2006 = vmatpush1.bf16.msra.mxu0 0
          %2007 = vmatprep.subr.bf16.mxu0 0
          %2008 = vmatpush1.bf16.msra.mxu0 0
          %2009 = vmatprep.subr.bf16.mxu0 0
          %2010 = vmatpush1.bf16.msra.mxu0 0
          %2011 = vmatprep.subr.bf16.mxu0 0
          %2012 = vmatpush1.bf16.msra.mxu0 0
          %2013 = vmatprep.subr.bf16.mxu0 0
          %2014 = vmatpush1.bf16.msra.mxu0 0
          %2015 = vmatprep.subr.bf16.mxu0 0
          %2016 = vmatpush1.bf16.msra.mxu0 0
          %2017 = vmatprep.subr.bf16.mxu0 0
          %2018 = vmatpush1.bf16.msra.mxu0 0
          %2019 = vmatprep.subr.bf16.mxu0 0
          %2020 = vmatpush1.bf16.msra.mxu0 0
          %2021 = vmatprep.subr.bf16.mxu0 0
          %2022 = vmatpush1.bf16.msra.mxu0 0
          %2023 = vmatprep.subr.bf16.mxu0 0
          %2024 = vmatpush1.bf16.msra.mxu0 0
          %2025 = vmatprep.subr.bf16.mxu0 0
          %2026 = vmatpush1.bf16.msra.mxu0 0
          %2027 = vmatprep.mubr.bf16.mxu0 0
          %2028 = vmatmul.mubr.bf16.gmra.mrb[0].mxu0 %v1993
          %v2029 = vpop.f32.mrb[0].mxu0
          %v2030 = vadd.f32 %v1970, %v2029
          %v2031 = vpop.f32.mrb[0].mxu0
          %v2032 = vpop.f32.mrb[0].mxu0
          %v2033 = vpop.f32.mrb[0].mxu0
          %2034 = vdwg.mxu0
          %2035 = vst [vmem:[#allocation16] sm:$0x3] %v2030
        $region100: #{tpu_custom_call.1} parent=55 // pred_fallthru
          _
        // Predicated region
        $region101: #{tpu_custom_call.1} parent=55 // pred_check
          %p2036 = pneg %p281
        $region102: #{tpu_custom_call.1} parent=55 // pred_check_branch
          %2038 = sbr.rel (%p2036) target = $region104
        $region103: #{tpu_custom_call.1} parent=55 // pred_region
          %s2039 = smul.u32 2, %s31
          %s2041 = ssub.s32 128, 128
          %2042 = vsyncadd [#allocation4], %s2041
          %s2043 = smul.addr %s2039, 64
          %s2044 = scalar_lea.hbm %s9, %s2043
          %s2045 = sshll.u32 [#allocation15], 4
          %s2046 = int_to_ptr.vmem [resolvable:$true] %s2045
          %2051 = dma.vmem_to_hbm [thread:$0]  %s2046, 128, %s2044, [#allocation4], 64, 64, 4
        $region104: #{tpu_custom_call.1} parent=55 // pred_fallthru
          _
        // Predicated region
        $region105: #{tpu_custom_call.1} parent=55 // pred_check
          %p2052 = pneg %p307
        $region106: #{tpu_custom_call.1} parent=55 // pred_check_branch
          %2054 = sbr.rel (%p2052) target = $region108
        $region107: #{tpu_custom_call.1} parent=55 // pred_region
          %s2056 = ssub.s32 32, 32
          %2057 = vsyncadd [#allocation17], %s2056
          %s2058 = smul.addr %s31, 32
          %s2059 = scalar_lea.hbm %s10, %s2058
          %s2061 = sshll.u32 [#allocation16], 4
          %s2062 = int_to_ptr.vmem [resolvable:$true] %s2061
          %2064 = dma.vmem_to_hbm [thread:$0]  %s2062, 32, %s2059, [#allocation17]
        $region108: #{tpu_custom_call.1} parent=55 // pred_fallthru
          _
        // Predicated region
        $region109: #{tpu_custom_call.1} parent=55 // pred_check
          %p2065 = pneg %p281
        $region110: #{tpu_custom_call.1} parent=55 // pred_check_branch
          %2067 = sbr.rel (%p2065) target = $region112
        $region111: #{tpu_custom_call.1} parent=55 // pred_region
          %2068 = dma.done [#allocation4], 128
        $region112: #{tpu_custom_call.1} parent=55 // pred_fallthru
          _
        // Predicated region
        $region113: #{tpu_custom_call.1} parent=55 // pred_check
          %p2069 = pneg %p307
        $region114: #{tpu_custom_call.1} parent=55 // pred_check_branch
          %2071 = sbr.rel (%p2069) target = $region116
        $region115: #{tpu_custom_call.1} parent=55 // pred_region
          %2072 = dma.done [#allocation17], 32
        $region116: #{tpu_custom_call.1} parent=55 // pred_fallthru
          _
      $region56: #{tpu_custom_call.1} parent=5 // pred_fallthru
        _
      %p2073 = scmp.le.s32.totalorder 2, %s22
      // Predicated region
      $region117: #{tpu_custom_call.1} parent=5 // pred_check
        %p2074 = pneg %p2073
      $region118: #{tpu_custom_call.1} parent=5 // pred_check_branch
        %2076 = sbr.rel (%p2074) target = $region120
      $region119: #{tpu_custom_call.1} parent=5 // pred_region
        %s2077 = ssub.s32 %s22, 2
      $region120: #{tpu_custom_call.1} parent=5 // pred_fallthru
        _
    $region6: #{tpu_custom_call.1} parent=1 // loop_footer
      %s26 = sadd.s32 1, %s22
    $region7: #{tpu_custom_call.1} parent=1 // loop_footer_branch
      %21 = sbr.rel target = $region3
    $region8: #{tpu_custom_call.1} parent=1 // loop_exit
      _
    %2078 = vsyncpa [#allocation3], 1
    %s2079 = scalar_lea.sflag [#allocation3], 1
    %2080 = vsyncpa %s2079, 1
    %2081 = vsyncpa [#allocation6], 1
    %2082 = vsyncpa [#allocation14], 1
    %2083 = vsyncpa [#allocation4], 1
    %s2084 = scalar_lea.sflag [#allocation4], 1
    %2085 = vsyncpa %s2084, 1
    %2086 = vsyncpa [#allocation17], 1

</llo_original>
